<compile_context>
chip_gen: v7x
topology: tpu7x:2x2x1
jax: 0.10.0
libtpu: 0.0.40
codegen_flags: <defaults>
</compile_context>

<pallas_src>
import functools
import math

import numpy as np

import jax
import jax.numpy as jnp
from jax.experimental import pallas as pl
from jax.experimental.pallas import tpu as pltpu


# -----------------------------------------------------------------------------
# Pallas kernel (one grid step == TM rows == TM/B patches):
#   per-patch BatchNorm1d (training stats, affine pre-folded)
#   -> Linear(D,1024) -> ReLU -> Linear(1024,256) -> L2 normalize (eps=1e-7)
# -----------------------------------------------------------------------------
def _freq_patch_mlp_kernel(x_ref, g_ref, w1_ref, b1_ref, w2_ref, b2_ref, o_ref,
                           *, inv_b):
    x = x_ref[...]                                            # (TM, D) f32

    # BatchNorm1d, training mode, per-patch groups of B consecutive rows.
    # Group sums via a (TM, TM) 0/1 grouping matmul (MXU) — avoids cross-sublane
    # reshapes; xc computed once and reused for the biased variance.
    g = g_ref[...]                                            # (TM, TM) f32 0/1
    mean = jnp.dot(g, x, preferred_element_type=jnp.float32) * inv_b
    xc = x - mean
    var = jnp.dot(g, xc * xc, preferred_element_type=jnp.float32) * inv_b
    xn = xc * jax.lax.rsqrt(var + 1e-5)
    # (BN affine gamma/beta were folded into w1/b1 at init.)

    # MLP: Linear -> ReLU -> Linear.  bf16 operands on the MXU, f32 accumulate.
    h = jnp.dot(xn.astype(jnp.bfloat16), w1_ref[...],
                preferred_element_type=jnp.float32)           # (TM, 1024)
    h = jnp.maximum(h + b1_ref[...], 0.0)
    y = jnp.dot(h.astype(jnp.bfloat16), w2_ref[...],
                preferred_element_type=jnp.float32)           # (TM, 256)
    y = y + b2_ref[...]

    # L2 normalization: y / (||y||_2 + 1e-7); sqrt + approx reciprocal -> EUP.
    norm = jnp.sqrt(jnp.sum(y * y, axis=1, keepdims=True))    # (TM, 1)
    o_ref[...] = y * pl.reciprocal(norm + 1e-7, approx=True)


def _pick_rows_per_block(total_rows, batch):
    """Rows per grid step: target ~256 MXU rows (v6e/v7x 2x256^2 MXU; 128 also
    fine on v5e), multiple of both B (BN groups intact) and 8 (sublane tile),
    dividing total_rows.  Falls back to one full-array block."""
    target = 256
    if total_rows <= target:
        return total_rows                       # single step, full-array block
    unit = batch * 8 // math.gcd(batch, 8)
    tm = (target // unit) * unit
    while tm >= unit:
        if total_rows % tm == 0:
            return tm
        tm -= unit
    return total_rows


def _group_matrix(rows_per_block, batch):
    """(TM, TM) 0/1 matrix: 1 where two rows belong to the same patch group."""
    idx = jnp.arange(rows_per_block)
    same = (idx[:, None] // batch) == (idx[None, :] // batch)
    return same.astype(jnp.float32)


def _freq_patch_mlp_fused(x, g, w1, b1, w2, b2, batch):
    """x: (N*B, D) f32, rows ordered patch-major.  Returns (N*B, 256) f32.
    Weights stay VMEM-resident across the grid via constant index_maps."""
    rows, d = x.shape
    tm = g.shape[0]
    h1 = w1.shape[1]
    do = w2.shape[1]
    assert rows % tm == 0 and tm % batch == 0

    kernel = functools.partial(_freq_patch_mlp_kernel, inv_b=1.0 / batch)

    # Advisory cost hint: main matmuls + grouping matmuls; BN rsqrt ~ rows*D
    # (plus one sqrt + one reciprocal per row).
    flops = 2 * rows * (d * h1 + h1 * do) + 4 * rows * tm * d
    transcendentals = rows * d + 2 * rows
    bytes_accessed = (x.size * 4 + rows * do * 4 + g.size * 4
                      + w1.size * 2 + b1.size * 4 + w2.size * 2 + b2.size * 4)

    # VMEM budget from the actual blocks (x/out double-buffered, weights
    # single-buffered via pl.Buffered(1)), with generous headroom.
    block_bytes = (2 * tm * d * 4 + 2 * tm * do * 4 + tm * tm * 4
                   + d * h1 * 2 + h1 * 4 + h1 * do * 2 + do * 4)
    vmem_limit = int(min(max(2 * block_bytes + (4 << 20), 16 << 20), 64 << 20))

    # NOTE: w1 is kept fully VMEM-resident (D*1024*2 bytes in bf16).  For very
    # large input_dim (approaching v7x's 64 MiB VMEM) add a K-tiling grid axis
    # marked "arbitrary" with an f32 accumulator scratch instead.
    grid_spec = pltpu.PrefetchScalarGridSpec(
        num_scalar_prefetch=0,
        grid=(rows // tm,),
        in_specs=[
            pl.BlockSpec((tm, d), lambda r: (r, 0)),          # row slab
            pl.BlockSpec((tm, tm), lambda r: (0, 0),          # resident consts
                         pipeline_mode=pl.Buffered(1)),
            pl.BlockSpec((d, h1), lambda r: (0, 0),
                         pipeline_mode=pl.Buffered(1)),
            pl.BlockSpec((1, h1), lambda r: (0, 0),
                         pipeline_mode=pl.Buffered(1)),
            pl.BlockSpec((h1, do), lambda r: (0, 0),
                         pipeline_mode=pl.Buffered(1)),
            pl.BlockSpec((1, do), lambda r: (0, 0),
                         pipeline_mode=pl.Buffered(1)),
        ],
        out_specs=pl.BlockSpec((tm, do), lambda r: (r, 0)),   # sublane-dense
    )

    return pl.pallas_call(
        kernel,
        out_shape=jax.ShapeDtypeStruct((rows, do), jnp.float32),
        grid_spec=grid_spec,
        compiler_params=pltpu.CompilerParams(
            # Weight-DMA bound + tiny grid after batching: do NOT shard the
            # patch axis across v7x's 2 TCs (would duplicate weight traffic).
            dimension_semantics=("arbitrary",),
            vmem_limit_bytes=vmem_limit),
        cost_estimate=pl.CostEstimate(
            flops=flops,
            transcendentals=transcendentals,
            bytes_accessed=bytes_accessed),
    )(x, g, w1, b1, w2, b2)


@jax.jit
def _fft_and_mlp(crops, g, w1, b1, w2, b2):
    """crops: (N, B, C, P, P) f32 -> (N, B, 256) f32, one device dispatch."""
    n, b = crops.shape[0], crops.shape[1]
    # TODO(synk): FFT has no Pallas primitive; 2-D ortho FFT runs in XLA here.
    freq = jnp.fft.fft2(crops, norm="ortho")
    x = jnp.stack([freq.real, freq.imag], axis=-1)            # (N,B,C,P,P,2)
    x = x.reshape(n * b, -1).astype(jnp.float32)              # row = p*B + b
    out = _freq_patch_mlp_fused(x, g, w1, b1, w2, b2, b)      # (N*B, 256)
    return out.reshape(n, b, -1)


# -----------------------------------------------------------------------------
# Module-equivalent wrapper
# -----------------------------------------------------------------------------
class FreqPatchPallas:
    def __init__(self, input_channels, freq_patch_size, freq_num_patches, key):
        self.freq_patch_size = freq_patch_size
        self.freq_num_patches = freq_num_patches
        input_dim = 2 * input_channels * freq_patch_size * freq_patch_size
        self.input_dim = input_dim

        k1, k2, k3, k4 = jax.random.split(key, 4)
        # Deterministic synthetic parameters (shapes match nn.Linear / BN1d).
        w1 = (jax.random.normal(k1, (input_dim, 1024), jnp.float32)
              * (1.0 / jnp.sqrt(input_dim)))
        b1 = jax.random.normal(k2, (1, 1024), jnp.float32) * 0.01
        w2 = (jax.random.normal(k3, (1024, 256), jnp.float32)
              * (1.0 / jnp.sqrt(1024.0)))
        b2 = jax.random.normal(k4, (1, 256), jnp.float32) * 0.01
        # BatchNorm1d affine params (PyTorch default init: weight=1, bias=0).
        gamma = jnp.ones((1, input_dim), jnp.float32)
        beta = jnp.zeros((1, input_dim), jnp.float32)

        # Fold BN affine into the first Linear (exact, once, at init):
        #   (xn*gamma + beta) @ w1 + b1 == xn @ (gamma^T * w1) + (beta @ w1 + b1)
        # NOTE: only valid while gamma/beta stay frozen (inference path).
        w1_folded = gamma.reshape(-1, 1) * w1
        b1_folded = beta @ w1 + b1

        # Weights in bf16 (halves the dominant HBM weight traffic, MXU-native);
        # biases / BN stats / accumulators stay f32.
        self.w1 = w1_folded.astype(jnp.bfloat16)
        self.b1 = b1_folded.astype(jnp.float32)
        self.w2 = w2.astype(jnp.bfloat16)
        self.b2 = b2.astype(jnp.float32)

    def __call__(self, feats, patch_ids=None):
        # feats layout: NCHW, matching the PyTorch module.
        B, C, H, W = feats.shape
        P = self.freq_patch_size

        return_ids = []
        ids = []
        for i in range(self.freq_num_patches):
            if patch_ids is not None:
                sx, sy = patch_ids[i]
            else:
                sx = int(np.random.permutation(H - P)[0])
                sy = int(np.random.permutation(W - P)[0])
                return_ids.append((sx, sy))
            ids.append((sx, sy))

        # Stack all patch crops; FFT + flatten + MLP fused under one jit.
        crops = jnp.stack(
            [feats[:, :, sx:sx + P, sy:sy + P] for (sx, sy) in ids], axis=0)

        tm = _pick_rows_per_block(self.freq_num_patches * B, B)
        g = _group_matrix(tm, B)
        out = _fft_and_mlp(crops, g, self.w1, self.b1, self.w2, self.b2)

        # Per-patch list matches the PyTorch return contract; `out` (N, B, 256)
        # is the fused array downstream code should prefer.
        return_feats = [out[i] for i in range(self.freq_num_patches)]
        return return_feats, return_ids


if __name__ == "__main__":
    key = jax.random.PRNGKey(0)
    k_feats, k_params = jax.random.split(key)

    # Small shapes consistent with the module's forward.
    B, C, H, W = 2, 4, 16, 16
    freq_patch_size = 8
    freq_num_patches = 2

    feats = jax.random.normal(k_feats, (B, C, H, W), jnp.float32)  # NCHW
    # Deterministic patch ids (PyTorch path with patch_ids=None uses np.random;
    # we pass explicit ids for reproducibility).
    patch_ids = [(1, 2), (5, 3)]

    model = FreqPatchPallas(C, freq_patch_size, freq_num_patches, k_params)
    return_feats, return_ids = model(feats, patch_ids)

    for f in return_feats:
        jax.block_until_ready(f)
        assert f.shape == (B, 256), f.shape

    print("KERNEL_OK")
</pallas_src>

<mosaic_0001>
module attributes {stable_mosaic.version = 11 : i64} {
  func.func @_freq_patch_mlp_kernel(%arg0: i32, %arg1: memref<4x512xf32, #tpu.memory_space<vmem>>, %arg2: memref<4x4xf32, #tpu.memory_space<vmem>>, %arg3: memref<512x1024xbf16, #tpu.memory_space<vmem>>, %arg4: memref<1x1024xf32, #tpu.memory_space<vmem>>, %arg5: memref<1024x256xbf16, #tpu.memory_space<vmem>>, %arg6: memref<1x256xf32, #tpu.memory_space<vmem>>, %arg7: memref<4x256xf32, #tpu.memory_space<vmem>>) attributes {dimension_semantics = [#tpu.dimension_semantics<arbitrary>], iteration_bounds = array<i64: 1>, scalar_prefetch = 0 : i64, scratch_operands = 0 : i64, tpu.core_type = #tpu.core_type<tc>, window_params = [{transform_indices = @transform_0, window_bounds = array<i64: 4, 512>}, {pipeline_mode = #tpu.pipeline_mode<synchronous>, transform_indices = @transform_1, window_bounds = array<i64: 4, 4>}, {pipeline_mode = #tpu.pipeline_mode<synchronous>, transform_indices = @transform_2, window_bounds = array<i64: 512, 1024>}, {pipeline_mode = #tpu.pipeline_mode<synchronous>, transform_indices = @transform_3, window_bounds = array<i64: 1, 1024>}, {pipeline_mode = #tpu.pipeline_mode<synchronous>, transform_indices = @transform_4, window_bounds = array<i64: 1024, 256>}, {pipeline_mode = #tpu.pipeline_mode<synchronous>, transform_indices = @transform_5, window_bounds = array<i64: 1, 256>}, {transform_indices = @transform_6, window_bounds = array<i64: 4, 256>}]} {
    %c0 = arith.constant 0 : index
    %c0_0 = arith.constant 0 : index
    %0 = vector.load %arg1[%c0, %c0_0] : memref<4x512xf32, #tpu.memory_space<vmem>>, vector<4x512xf32>
    %c0_1 = arith.constant 0 : index
    %c0_2 = arith.constant 0 : index
    %1 = vector.load %arg2[%c0_1, %c0_2] : memref<4x4xf32, #tpu.memory_space<vmem>>, vector<4x4xf32>
    %cst = arith.constant dense<0.000000e+00> : vector<4x512xf32>
    %2 = tpu.matmul %1, %0, %cst {dimension_numbers = #tpu.dot_dimension_numbers<[1], [0], [0], [1], [0, 0, 1, 1], [], []>} : vector<4x4xf32>, vector<4x512xf32>, vector<4x512xf32> -> vector<4x512xf32>
    %cst_3 = arith.constant 5.000000e-01 : f32
    %3 = vector.broadcast %cst_3 : f32 to vector<4x512xf32>
    %4 = arith.mulf %2, %3 : vector<4x512xf32>
    %5 = arith.subf %0, %4 : vector<4x512xf32>
    %6 = arith.mulf %5, %5 : vector<4x512xf32>
    %cst_4 = arith.constant dense<0.000000e+00> : vector<4x512xf32>
    %7 = tpu.matmul %1, %6, %cst_4 {dimension_numbers = #tpu.dot_dimension_numbers<[1], [0], [0], [1], [0, 0, 1, 1], [], []>} : vector<4x4xf32>, vector<4x512xf32>, vector<4x512xf32> -> vector<4x512xf32>
    %cst_5 = arith.constant 5.000000e-01 : f32
    %8 = vector.broadcast %cst_5 : f32 to vector<4x512xf32>
    %9 = arith.mulf %7, %8 : vector<4x512xf32>
    %cst_6 = arith.constant 9.99999974E-6 : f32
    %10 = vector.broadcast %cst_6 : f32 to vector<4x512xf32>
    %11 = arith.addf %9, %10 : vector<4x512xf32>
    %12 = math.rsqrt %11 : vector<4x512xf32>
    %13 = arith.mulf %5, %12 : vector<4x512xf32>
    %14 = arith.truncf %13 : vector<4x512xf32> to vector<4x512xbf16>
    %c0_7 = arith.constant 0 : index
    %c0_8 = arith.constant 0 : index
    %15 = vector.load %arg3[%c0_7, %c0_8] : memref<512x1024xbf16, #tpu.memory_space<vmem>>, vector<512x1024xbf16>
    %cst_9 = arith.constant dense<0.000000e+00> : vector<4x1024xf32>
    %16 = tpu.matmul %14, %15, %cst_9 {dimension_numbers = #tpu.dot_dimension_numbers<[1], [0], [0], [1], [0, 0, 1, 1], [], []>} : vector<4x512xbf16>, vector<512x1024xbf16>, vector<4x1024xf32> -> vector<4x1024xf32>
    %c0_10 = arith.constant 0 : index
    %c0_11 = arith.constant 0 : index
    %17 = vector.load %arg4[%c0_10, %c0_11] : memref<1x1024xf32, #tpu.memory_space<vmem>>, vector<1x1024xf32>
    %18 = vector.broadcast %17 : vector<1x1024xf32> to vector<4x1024xf32>
    %19 = arith.addf %16, %18 : vector<4x1024xf32>
    %cst_12 = arith.constant 0.000000e+00 : f32
    %20 = vector.broadcast %cst_12 : f32 to vector<4x1024xf32>
    %21 = arith.maximumf %19, %20 : vector<4x1024xf32>
    %22 = arith.truncf %21 : vector<4x1024xf32> to vector<4x1024xbf16>
    %c0_13 = arith.constant 0 : index
    %c0_14 = arith.constant 0 : index
    %23 = vector.load %arg5[%c0_13, %c0_14] : memref<1024x256xbf16, #tpu.memory_space<vmem>>, vector<1024x256xbf16>
    %cst_15 = arith.constant dense<0.000000e+00> : vector<4x256xf32>
    %24 = tpu.matmul %22, %23, %cst_15 {dimension_numbers = #tpu.dot_dimension_numbers<[1], [0], [0], [1], [0, 0, 1, 1], [], []>} : vector<4x1024xbf16>, vector<1024x256xbf16>, vector<4x256xf32> -> vector<4x256xf32>
    %c0_16 = arith.constant 0 : index
    %c0_17 = arith.constant 0 : index
    %25 = vector.load %arg6[%c0_16, %c0_17] : memref<1x256xf32, #tpu.memory_space<vmem>>, vector<1x256xf32>
    %26 = vector.broadcast %25 : vector<1x256xf32> to vector<4x256xf32>
    %27 = arith.addf %24, %26 : vector<4x256xf32>
    %28 = arith.mulf %27, %27 : vector<4x256xf32>
    %cst_18 = arith.constant dense<0.000000e+00> : vector<4xf32>
    %29 = vector.multi_reduction <add>, %28, %cst_18 [1] : vector<4x256xf32> to vector<4xf32>
    %30 = vector.shape_cast %29 : vector<4xf32> to vector<4x1xf32>
    %31 = math.sqrt %30 : vector<4x1xf32>
    %cst_19 = arith.constant 1.000000e-07 : f32
    %32 = vector.broadcast %cst_19 : f32 to vector<4x1xf32>
    %33 = arith.addf %31, %32 : vector<4x1xf32>
    %34 = tpu.reciprocal %33 {approx = true} : vector<4x1xf32> -> vector<4x1xf32>
    %35 = vector.broadcast %34 : vector<4x1xf32> to vector<4x256xf32>
    %36 = arith.mulf %27, %35 : vector<4x256xf32>
    %c0_20 = arith.constant 0 : index
    %c0_21 = arith.constant 0 : index
    %37 = vector.load %arg7[%c0_20, %c0_21] : memref<4x256xf32, #tpu.memory_space<vmem>>, vector<4x256xf32>
    tpu.vector_store %arg7[%c0_20, %c0_21], %36 {strides = array<i32>} : memref<4x256xf32, #tpu.memory_space<vmem>>, vector<4x256xf32>,
    return
  }
  func.func @transform_0(%arg0: i32) -> (i32, i32) {
    %c0_i32 = arith.constant 0 : i32
    %c0_i32_0 = arith.constant 0 : i32
    return %arg0, %c0_i32 : i32, i32
  }
  func.func @transform_1(%arg0: i32) -> (i32, i32) {
    %c0_i32 = arith.constant 0 : i32
    %c0_i32_0 = arith.constant 0 : i32
    %c0_i32_1 = arith.constant 0 : i32
    return %c0_i32, %c0_i32_0 : i32, i32
  }
  func.func @transform_2(%arg0: i32) -> (i32, i32) {
    %c0_i32 = arith.constant 0 : i32
    %c0_i32_0 = arith.constant 0 : i32
    %c0_i32_1 = arith.constant 0 : i32
    return %c0_i32, %c0_i32_0 : i32, i32
  }
  func.func @transform_3(%arg0: i32) -> (i32, i32) {
    %c0_i32 = arith.constant 0 : i32
    %c0_i32_0 = arith.constant 0 : i32
    %c0_i32_1 = arith.constant 0 : i32
    return %c0_i32, %c0_i32_0 : i32, i32
  }
  func.func @transform_4(%arg0: i32) -> (i32, i32) {
    %c0_i32 = arith.constant 0 : i32
    %c0_i32_0 = arith.constant 0 : i32
    %c0_i32_1 = arith.constant 0 : i32
    return %c0_i32, %c0_i32_0 : i32, i32
  }
  func.func @transform_5(%arg0: i32) -> (i32, i32) {
    %c0_i32 = arith.constant 0 : i32
    %c0_i32_0 = arith.constant 0 : i32
    %c0_i32_1 = arith.constant 0 : i32
    return %c0_i32, %c0_i32_0 : i32, i32
  }
  func.func @transform_6(%arg0: i32) -> (i32, i32) {
    %c0_i32 = arith.constant 0 : i32
    %c0_i32_0 = arith.constant 0 : i32
    return %arg0, %c0_i32 : i32, i32
  }
}

</mosaic_0001>

<llo_original>
// kernel: _fft_and_mlp.1
$region0: #{_fft_and_mlp.1}
  #allocation0 [shape = 'u32[]', space=smem, size = 0x4, offset = 0x4, fixed_abs, tag = 'smem constant byte address 0x4 - core index']
  #allocation1 [shape = 'u32[144,128]{1,0:T(1,128)}', space=vmem, size = 0x12000, scoped, tag = 'internal scratch']
  %s0 = inlined_call_operand.vmem [shape: f32[4,512], index: 0, kind: input, shape index: {}]
  %s1 = inlined_call_operand.vmem [shape: f32[4,4], index: 1, kind: input, shape index: {}]
  %s2 = inlined_call_operand.vmem [shape: bf16[512,1024], index: 2, kind: input, shape index: {}]
  %s3 = inlined_call_operand.vmem [shape: f32[1,1024], index: 3, kind: input, shape index: {}]
  %s4 = inlined_call_operand.vmem [shape: bf16[1024,256], index: 4, kind: input, shape index: {}]
  %s5 = inlined_call_operand.vmem [shape: f32[1,256], index: 5, kind: input, shape index: {}]
  %s6 = inlined_call_operand.vmem [shape: f32[4,256], index: 6, kind: output, shape index: {}]
  %s7 = sld [smem:[#allocation0]]
  $region34: #{_fft_and_mlp.1} parent=0
    _
  %s9 = ssub.s32 1, %s7
  %s10 = scalar_select 0, %s9, %s7
  // Predicated region
  $region2: #{_fft_and_mlp.1} parent=0 // pred_check
    _
  $region3: #{_fft_and_mlp.1} parent=0 // pred_check_branch
    %12 = sbr.rel (0) target = $region5
  $region4: #{_fft_and_mlp.1} parent=0 // pred_region
    _
  $region5: #{_fft_and_mlp.1} parent=0 // pred_fallthru
    _
  // Predicated region
  $region6: #{_fft_and_mlp.1} parent=0 // pred_check
    _
  $region7: #{_fft_and_mlp.1} parent=0 // pred_check_branch
    %14 = sbr.rel (0) target = $region9
  $region8: #{_fft_and_mlp.1} parent=0 // pred_region
    _
  $region9: #{_fft_and_mlp.1} parent=0 // pred_fallthru
    _
  // Predicated region
  $region10: #{_fft_and_mlp.1} parent=0 // pred_check
    _
  $region11: #{_fft_and_mlp.1} parent=0 // pred_check_branch
    %16 = sbr.rel (0) target = $region13
  $region12: #{_fft_and_mlp.1} parent=0 // pred_region
    _
  $region13: #{_fft_and_mlp.1} parent=0 // pred_fallthru
    _
  // Predicated region
  $region14: #{_fft_and_mlp.1} parent=0 // pred_check
    _
  $region15: #{_fft_and_mlp.1} parent=0 // pred_check_branch
    %18 = sbr.rel (0) target = $region17
  $region16: #{_fft_and_mlp.1} parent=0 // pred_region
    _
  $region17: #{_fft_and_mlp.1} parent=0 // pred_fallthru
    _
  // Predicated region
  $region18: #{_fft_and_mlp.1} parent=0 // pred_check
    _
  $region19: #{_fft_and_mlp.1} parent=0 // pred_check_branch
    %20 = sbr.rel (0) target = $region21
  $region20: #{_fft_and_mlp.1} parent=0 // pred_region
    _
  $region21: #{_fft_and_mlp.1} parent=0 // pred_fallthru
    _
  // Predicated region
  $region22: #{_fft_and_mlp.1} parent=0 // pred_check
    _
  $region23: #{_fft_and_mlp.1} parent=0 // pred_check_branch
    %22 = sbr.rel (0) target = $region25
  $region24: #{_fft_and_mlp.1} parent=0 // pred_region
    _
  $region25: #{_fft_and_mlp.1} parent=0 // pred_fallthru
    _
  %v23 = vld [vmem:[%s0] sm:$0xff]
  %v24 = vld [vmem:[%s0 + $0x8] sm:$0xff]
  %v25 = vld [vmem:[%s1] sm:$0xf]
  %v28 = vcombine.high %v23, %v23
  %v29 = vcombine.high %v24, %v24
  %vm30 = vcmask 31744
  %v32 = vsel %vm30, %v25, 0
  %vm34 = vcmask 1043456
  %v35 = vsel %vm34, %v23, 0
  %v37 = vsel %vm34, %v28, 0
  %v39 = vsel %vm34, %v24, 0
  %v41 = vsel %vm34, %v29, 0
  %43 = vmatprep.subr.mxu0 %v37
  %44 = vmatpush1.msra.mxu0 %v35
  %45 = vmatprep.subr.mxu0 0.0
  %46 = vmatpush1.msra.mxu0 0.0
  %47 = vmatprep.subr.mxu0 0.0
  %48 = vmatpush1.msra.mxu0 0.0
  %49 = vmatprep.subr.mxu0 0.0
  %50 = vmatpush1.msra.mxu0 0.0
  %51 = vmatprep.subr.mxu0 0.0
  %52 = vmatpush1.msra.mxu0 0.0
  %53 = vmatprep.subr.mxu0 0.0
  %54 = vmatpush1.msra.mxu0 0.0
  %55 = vmatprep.subr.mxu0 0.0
  %56 = vmatpush1.msra.mxu0 0.0
  %57 = vmatprep.subr.mxu0 0.0
  %58 = vmatpush1.msra.mxu0 0.0
  %59 = vmatprep.subr.mxu0 0.0
  %60 = vmatpush1.msra.mxu0 0.0
  %61 = vmatprep.subr.mxu0 0.0
  %62 = vmatpush1.msra.mxu0 0.0
  %63 = vmatprep.subr.mxu0 0.0
  %64 = vmatpush1.msra.mxu0 0.0
  %65 = vmatprep.subr.mxu0 0.0
  %66 = vmatpush1.msra.mxu0 0.0
  %67 = vmatprep.subr.mxu0 0.0
  %68 = vmatpush1.msra.mxu0 0.0
  %69 = vmatprep.subr.mxu0 0.0
  %70 = vmatpush1.msra.mxu0 0.0
  %71 = vmatprep.subr.mxu0 0.0
  %72 = vmatpush1.msra.mxu0 0.0
  %73 = vmatprep.subr.mxu0 0.0
  %74 = vmatpush1.msra.mxu0 0.0
  %75 = vmatprep.subr.mxu0 0.0
  %76 = vmatpush1.msra.mxu0 0.0
  %77 = vmatprep.subr.mxu0 0.0
  %78 = vmatpush1.msra.mxu0 0.0
  %79 = vmatprep.subr.mxu0 0.0
  %80 = vmatpush1.msra.mxu0 0.0
  %81 = vmatprep.subr.mxu0 0.0
  %82 = vmatpush1.msra.mxu0 0.0
  %83 = vmatprep.subr.mxu0 0.0
  %84 = vmatpush1.msra.mxu0 0.0
  %85 = vmatprep.subr.mxu0 0.0
  %86 = vmatpush1.msra.mxu0 0.0
  %87 = vmatprep.subr.mxu0 0.0
  %88 = vmatpush1.msra.mxu0 0.0
  %89 = vmatprep.subr.mxu0 0.0
  %90 = vmatpush1.msra.mxu0 0.0
  %91 = vmatprep.subr.mxu0 0.0
  %92 = vmatpush1.msra.mxu0 0.0
  %93 = vmatprep.subr.mxu0 0.0
  %94 = vmatpush1.msra.mxu0 0.0
  %95 = vmatprep.subr.mxu0 0.0
  %96 = vmatpush1.msra.mxu0 0.0
  %97 = vmatprep.subr.mxu0 0.0
  %98 = vmatpush1.msra.mxu0 0.0
  %99 = vmatprep.subr.mxu0 0.0
  %100 = vmatpush1.msra.mxu0 0.0
  %101 = vmatprep.subr.mxu0 0.0
  %102 = vmatpush1.msra.mxu0 0.0
  %103 = vmatprep.subr.mxu0 0.0
  %104 = vmatpush1.msra.mxu0 0.0
  %105 = vmatprep.subr.mxu0 0.0
  %106 = vmatpush1.msra.mxu0 0.0
  %107 = vmatprep.mubr.f32.mxu0 0.0
  %108 = vmatmul.mubr.f32.gmra.mrb[0].mxu0 %v32
  %v109 = vpop.f32.mrb[0].mxu0
  %v110 = vadd.f32 0.0, %v109
  %v111 = vpop.f32.mrb[0].mxu0
  %v112 = vadd.f32 0.0, %v111
  %113 = vdwg.mxu0
  %114 = vmatprep.subr.mxu0 %v41
  %115 = vmatpush1.msra.mxu0 %v39
  %116 = vmatprep.subr.mxu0 0.0
  %117 = vmatpush1.msra.mxu0 0.0
  %118 = vmatprep.subr.mxu0 0.0
  %119 = vmatpush1.msra.mxu0 0.0
  %120 = vmatprep.subr.mxu0 0.0
  %121 = vmatpush1.msra.mxu0 0.0
  %122 = vmatprep.subr.mxu0 0.0
  %123 = vmatpush1.msra.mxu0 0.0
  %124 = vmatprep.subr.mxu0 0.0
  %125 = vmatpush1.msra.mxu0 0.0
  %126 = vmatprep.subr.mxu0 0.0
  %127 = vmatpush1.msra.mxu0 0.0
  %128 = vmatprep.subr.mxu0 0.0
  %129 = vmatpush1.msra.mxu0 0.0
  %130 = vmatprep.subr.mxu0 0.0
  %131 = vmatpush1.msra.mxu0 0.0
  %132 = vmatprep.subr.mxu0 0.0
  %133 = vmatpush1.msra.mxu0 0.0
  %134 = vmatprep.subr.mxu0 0.0
  %135 = vmatpush1.msra.mxu0 0.0
  %136 = vmatprep.subr.mxu0 0.0
  %137 = vmatpush1.msra.mxu0 0.0
  %138 = vmatprep.subr.mxu0 0.0
  %139 = vmatpush1.msra.mxu0 0.0
  %140 = vmatprep.subr.mxu0 0.0
  %141 = vmatpush1.msra.mxu0 0.0
  %142 = vmatprep.subr.mxu0 0.0
  %143 = vmatpush1.msra.mxu0 0.0
  %144 = vmatprep.subr.mxu0 0.0
  %145 = vmatpush1.msra.mxu0 0.0
  %146 = vmatprep.subr.mxu0 0.0
  %147 = vmatpush1.msra.mxu0 0.0
  %148 = vmatprep.subr.mxu0 0.0
  %149 = vmatpush1.msra.mxu0 0.0
  %150 = vmatprep.subr.mxu0 0.0
  %151 = vmatpush1.msra.mxu0 0.0
  %152 = vmatprep.subr.mxu0 0.0
  %153 = vmatpush1.msra.mxu0 0.0
  %154 = vmatprep.subr.mxu0 0.0
  %155 = vmatpush1.msra.mxu0 0.0
  %156 = vmatprep.subr.mxu0 0.0
  %157 = vmatpush1.msra.mxu0 0.0
  %158 = vmatprep.subr.mxu0 0.0
  %159 = vmatpush1.msra.mxu0 0.0
  %160 = vmatprep.subr.mxu0 0.0
  %161 = vmatpush1.msra.mxu0 0.0
  %162 = vmatprep.subr.mxu0 0.0
  %163 = vmatpush1.msra.mxu0 0.0
  %164 = vmatprep.subr.mxu0 0.0
  %165 = vmatpush1.msra.mxu0 0.0
  %166 = vmatprep.subr.mxu0 0.0
  %167 = vmatpush1.msra.mxu0 0.0
  %168 = vmatprep.subr.mxu0 0.0
  %169 = vmatpush1.msra.mxu0 0.0
  %170 = vmatprep.subr.mxu0 0.0
  %171 = vmatpush1.msra.mxu0 0.0
  %172 = vmatprep.subr.mxu0 0.0
  %173 = vmatpush1.msra.mxu0 0.0
  %174 = vmatprep.subr.mxu0 0.0
  %175 = vmatpush1.msra.mxu0 0.0
  %176 = vmatprep.subr.mxu0 0.0
  %177 = vmatpush1.msra.mxu0 0.0
  %178 = vmatprep.mubr.f32.mxu0 0.0
  %179 = vmatmul.mubr.f32.gmra.mrb[0].mxu0 %v32
  %v180 = vpop.f32.mrb[0].mxu0
  %v181 = vadd.f32 0.0, %v180
  %v182 = vpop.f32.mrb[0].mxu0
  %v183 = vadd.f32 0.0, %v182
  %184 = vdwg.mxu0
  %v185 = vmul.f32 %v110, 0.5
  %v186 = vmul.f32 %v112, 0.5
  %v187 = vmul.f32 %v181, 0.5
  %v188 = vmul.f32 %v183, 0.5
  %v193 = vcombine.low %v185, %v186
  %v194 = vcombine.low %v187, %v188
  %v197 = vsub.f32 %v23, %v193
  %v198 = vsub.f32 %v24, %v194
  %v199 = vmul.f32 %v197, %v197
  %v200 = vmul.f32 %v198, %v198
  %v203 = vcombine.high %v199, %v199
  %v204 = vcombine.high %v200, %v200
  %v205 = vsel %vm34, %v199, 0
  %v207 = vsel %vm34, %v203, 0
  %v209 = vsel %vm34, %v200, 0
  %v211 = vsel %vm34, %v204, 0
  %213 = vmatprep.subr.mxu0 %v207
  %214 = vmatpush1.msra.mxu0 %v205
  %215 = vmatprep.subr.mxu0 0.0
  %216 = vmatpush1.msra.mxu0 0.0
  %217 = vmatprep.subr.mxu0 0.0
  %218 = vmatpush1.msra.mxu0 0.0
  %219 = vmatprep.subr.mxu0 0.0
  %220 = vmatpush1.msra.mxu0 0.0
  %221 = vmatprep.subr.mxu0 0.0
  %222 = vmatpush1.msra.mxu0 0.0
  %223 = vmatprep.subr.mxu0 0.0
  %224 = vmatpush1.msra.mxu0 0.0
  %225 = vmatprep.subr.mxu0 0.0
  %226 = vmatpush1.msra.mxu0 0.0
  %227 = vmatprep.subr.mxu0 0.0
  %228 = vmatpush1.msra.mxu0 0.0
  %229 = vmatprep.subr.mxu0 0.0
  %230 = vmatpush1.msra.mxu0 0.0
  %231 = vmatprep.subr.mxu0 0.0
  %232 = vmatpush1.msra.mxu0 0.0
  %233 = vmatprep.subr.mxu0 0.0
  %234 = vmatpush1.msra.mxu0 0.0
  %235 = vmatprep.subr.mxu0 0.0
  %236 = vmatpush1.msra.mxu0 0.0
  %237 = vmatprep.subr.mxu0 0.0
  %238 = vmatpush1.msra.mxu0 0.0
  %239 = vmatprep.subr.mxu0 0.0
  %240 = vmatpush1.msra.mxu0 0.0
  %241 = vmatprep.subr.mxu0 0.0
  %242 = vmatpush1.msra.mxu0 0.0
  %243 = vmatprep.subr.mxu0 0.0
  %244 = vmatpush1.msra.mxu0 0.0
  %245 = vmatprep.subr.mxu0 0.0
  %246 = vmatpush1.msra.mxu0 0.0
  %247 = vmatprep.subr.mxu0 0.0
  %248 = vmatpush1.msra.mxu0 0.0
  %249 = vmatprep.subr.mxu0 0.0
  %250 = vmatpush1.msra.mxu0 0.0
  %251 = vmatprep.subr.mxu0 0.0
  %252 = vmatpush1.msra.mxu0 0.0
  %253 = vmatprep.subr.mxu0 0.0
  %254 = vmatpush1.msra.mxu0 0.0
  %255 = vmatprep.subr.mxu0 0.0
  %256 = vmatpush1.msra.mxu0 0.0
  %257 = vmatprep.subr.mxu0 0.0
  %258 = vmatpush1.msra.mxu0 0.0
  %259 = vmatprep.subr.mxu0 0.0
  %260 = vmatpush1.msra.mxu0 0.0
  %261 = vmatprep.subr.mxu0 0.0
  %262 = vmatpush1.msra.mxu0 0.0
  %263 = vmatprep.subr.mxu0 0.0
  %264 = vmatpush1.msra.mxu0 0.0
  %265 = vmatprep.subr.mxu0 0.0
  %266 = vmatpush1.msra.mxu0 0.0
  %267 = vmatprep.subr.mxu0 0.0
  %268 = vmatpush1.msra.mxu0 0.0
  %269 = vmatprep.subr.mxu0 0.0
  %270 = vmatpush1.msra.mxu0 0.0
  %271 = vmatprep.subr.mxu0 0.0
  %272 = vmatpush1.msra.mxu0 0.0
  %273 = vmatprep.subr.mxu0 0.0
  %274 = vmatpush1.msra.mxu0 0.0
  %275 = vmatprep.subr.mxu0 0.0
  %276 = vmatpush1.msra.mxu0 0.0
  %277 = vmatprep.mubr.f32.mxu0 0.0
  %278 = vmatmul.mubr.f32.gmra.mrb[0].mxu0 %v32
  %v279 = vpop.f32.mrb[0].mxu0
  %v280 = vadd.f32 0.0, %v279
  %v281 = vpop.f32.mrb[0].mxu0
  %v282 = vadd.f32 0.0, %v281
  %283 = vdwg.mxu0
  %284 = vmatprep.subr.mxu0 %v211
  %285 = vmatpush1.msra.mxu0 %v209
  %286 = vmatprep.subr.mxu0 0.0
  %287 = vmatpush1.msra.mxu0 0.0
  %288 = vmatprep.subr.mxu0 0.0
  %289 = vmatpush1.msra.mxu0 0.0
  %290 = vmatprep.subr.mxu0 0.0
  %291 = vmatpush1.msra.mxu0 0.0
  %292 = vmatprep.subr.mxu0 0.0
  %293 = vmatpush1.msra.mxu0 0.0
  %294 = vmatprep.subr.mxu0 0.0
  %295 = vmatpush1.msra.mxu0 0.0
  %296 = vmatprep.subr.mxu0 0.0
  %297 = vmatpush1.msra.mxu0 0.0
  %298 = vmatprep.subr.mxu0 0.0
  %299 = vmatpush1.msra.mxu0 0.0
  %300 = vmatprep.subr.mxu0 0.0
  %301 = vmatpush1.msra.mxu0 0.0
  %302 = vmatprep.subr.mxu0 0.0
  %303 = vmatpush1.msra.mxu0 0.0
  %304 = vmatprep.subr.mxu0 0.0
  %305 = vmatpush1.msra.mxu0 0.0
  %306 = vmatprep.subr.mxu0 0.0
  %307 = vmatpush1.msra.mxu0 0.0
  %308 = vmatprep.subr.mxu0 0.0
  %309 = vmatpush1.msra.mxu0 0.0
  %310 = vmatprep.subr.mxu0 0.0
  %311 = vmatpush1.msra.mxu0 0.0
  %312 = vmatprep.subr.mxu0 0.0
  %313 = vmatpush1.msra.mxu0 0.0
  %314 = vmatprep.subr.mxu0 0.0
  %315 = vmatpush1.msra.mxu0 0.0
  %316 = vmatprep.subr.mxu0 0.0
  %317 = vmatpush1.msra.mxu0 0.0
  %318 = vmatprep.subr.mxu0 0.0
  %319 = vmatpush1.msra.mxu0 0.0
  %320 = vmatprep.subr.mxu0 0.0
  %321 = vmatpush1.msra.mxu0 0.0
  %322 = vmatprep.subr.mxu0 0.0
  %323 = vmatpush1.msra.mxu0 0.0
  %324 = vmatprep.subr.mxu0 0.0
  %325 = vmatpush1.msra.mxu0 0.0
  %326 = vmatprep.subr.mxu0 0.0
  %327 = vmatpush1.msra.mxu0 0.0
  %328 = vmatprep.subr.mxu0 0.0
  %329 = vmatpush1.msra.mxu0 0.0
  %330 = vmatprep.subr.mxu0 0.0
  %331 = vmatpush1.msra.mxu0 0.0
  %332 = vmatprep.subr.mxu0 0.0
  %333 = vmatpush1.msra.mxu0 0.0
  %334 = vmatprep.subr.mxu0 0.0
  %335 = vmatpush1.msra.mxu0 0.0
  %336 = vmatprep.subr.mxu0 0.0
  %337 = vmatpush1.msra.mxu0 0.0
  %338 = vmatprep.subr.mxu0 0.0
  %339 = vmatpush1.msra.mxu0 0.0
  %340 = vmatprep.subr.mxu0 0.0
  %341 = vmatpush1.msra.mxu0 0.0
  %342 = vmatprep.subr.mxu0 0.0
  %343 = vmatpush1.msra.mxu0 0.0
  %344 = vmatprep.subr.mxu0 0.0
  %345 = vmatpush1.msra.mxu0 0.0
  %346 = vmatprep.subr.mxu0 0.0
  %347 = vmatpush1.msra.mxu0 0.0
  %348 = vmatprep.mubr.f32.mxu0 0.0
  %349 = vmatmul.mubr.f32.gmra.mrb[0].mxu0 %v32
  %v350 = vpop.f32.mrb[0].mxu0
  %v351 = vadd.f32 0.0, %v350
  %v352 = vpop.f32.mrb[0].mxu0
  %v353 = vadd.f32 0.0, %v352
  %354 = vdwg.mxu0
  %v355 = vmul.f32 %v280, 0.5
  %v356 = vmul.f32 %v282, 0.5
  %v357 = vmul.f32 %v351, 0.5
  %v358 = vmul.f32 %v353, 0.5
  %v359 = vadd.f32 %v355, 1e-05
  %v360 = vadd.f32 %v356, 1e-05
  %v361 = vadd.f32 %v357, 1e-05
  %v362 = vadd.f32 %v358, 1e-05
  %v363 = vrsqrt.pop %v359
  %v364 = vrsqrt.pop %v360
  %v365 = vrsqrt.pop %v361
  %v366 = vrsqrt.pop %v362
  %v371 = vcombine.low %v363, %v364
  %v372 = vcombine.low %v365, %v366
  %v375 = vmul.f32 %v197, %v371
  %v376 = vmul.f32 %v198, %v372
  %v379 = vcombine.high %v375, %v375
  %v380 = vcombine.high %v376, %v376
  %v383 = vpack.c.bf16 %v375, %v375
  %v384 = vpack.c.bf16 %v379, %v379
  %v385 = vpack.c.bf16 %v376, %v376
  %v386 = vpack.c.bf16 %v380, %v380
  %v387 = vld [vmem:[%s2] sm:$0xff]
  %v388 = vld [vmem:[%s2 + $0x8] sm:$0xff]
  %v389 = vld [vmem:[%s2 + $0x10] sm:$0xff]
  %v390 = vld [vmem:[%s2 + $0x18] sm:$0xff]
  %v391 = vld [vmem:[%s2 + $0x20] sm:$0xff]
  %v392 = vld [vmem:[%s2 + $0x28] sm:$0xff]
  %v393 = vld [vmem:[%s2 + $0x30] sm:$0xff]
  %v394 = vld [vmem:[%s2 + $0x38] sm:$0xff]
  %v395 = vld [vmem:[%s2 + $0x40] sm:$0xff]
  %v396 = vld [vmem:[%s2 + $0x48] sm:$0xff]
  %v397 = vld [vmem:[%s2 + $0x50] sm:$0xff]
  %v398 = vld [vmem:[%s2 + $0x58] sm:$0xff]
  %v399 = vld [vmem:[%s2 + $0x60] sm:$0xff]
  %v400 = vld [vmem:[%s2 + $0x68] sm:$0xff]
  %v401 = vld [vmem:[%s2 + $0x70] sm:$0xff]
  %v402 = vld [vmem:[%s2 + $0x78] sm:$0xff]
  %v403 = vld [vmem:[%s2 + $0x80] sm:$0xff]
  %v404 = vld [vmem:[%s2 + $0x88] sm:$0xff]
  %v405 = vld [vmem:[%s2 + $0x90] sm:$0xff]
  %v406 = vld [vmem:[%s2 + $0x98] sm:$0xff]
  %v407 = vld [vmem:[%s2 + $0xa0] sm:$0xff]
  %v408 = vld [vmem:[%s2 + $0xa8] sm:$0xff]
  %v409 = vld [vmem:[%s2 + $0xb0] sm:$0xff]
  %v410 = vld [vmem:[%s2 + $0xb8] sm:$0xff]
  %v411 = vld [vmem:[%s2 + $0xc0] sm:$0xff]
  %v412 = vld [vmem:[%s2 + $0xc8] sm:$0xff]
  %v413 = vld [vmem:[%s2 + $0xd0] sm:$0xff]
  %v414 = vld [vmem:[%s2 + $0xd8] sm:$0xff]
  %v415 = vld [vmem:[%s2 + $0xe0] sm:$0xff]
  %v416 = vld [vmem:[%s2 + $0xe8] sm:$0xff]
  %v417 = vld [vmem:[%s2 + $0xf0] sm:$0xff]
  %v418 = vld [vmem:[%s2 + $0xf8] sm:$0xff]
  %v419 = vld [vmem:[%s2 + $0x100] sm:$0xff]
  %v420 = vld [vmem:[%s2 + $0x108] sm:$0xff]
  %v421 = vld [vmem:[%s2 + $0x110] sm:$0xff]
  %v422 = vld [vmem:[%s2 + $0x118] sm:$0xff]
  %v423 = vld [vmem:[%s2 + $0x120] sm:$0xff]
  %v424 = vld [vmem:[%s2 + $0x128] sm:$0xff]
  %v425 = vld [vmem:[%s2 + $0x130] sm:$0xff]
  %v426 = vld [vmem:[%s2 + $0x138] sm:$0xff]
  %v427 = vld [vmem:[%s2 + $0x140] sm:$0xff]
  %v428 = vld [vmem:[%s2 + $0x148] sm:$0xff]
  %v429 = vld [vmem:[%s2 + $0x150] sm:$0xff]
  %v430 = vld [vmem:[%s2 + $0x158] sm:$0xff]
  %v431 = vld [vmem:[%s2 + $0x160] sm:$0xff]
  %v432 = vld [vmem:[%s2 + $0x168] sm:$0xff]
  %v433 = vld [vmem:[%s2 + $0x170] sm:$0xff]
  %v434 = vld [vmem:[%s2 + $0x178] sm:$0xff]
  %v435 = vld [vmem:[%s2 + $0x180] sm:$0xff]
  %v436 = vld [vmem:[%s2 + $0x188] sm:$0xff]
  %v437 = vld [vmem:[%s2 + $0x190] sm:$0xff]
  %v438 = vld [vmem:[%s2 + $0x198] sm:$0xff]
  %v439 = vld [vmem:[%s2 + $0x1a0] sm:$0xff]
  %v440 = vld [vmem:[%s2 + $0x1a8] sm:$0xff]
  %v441 = vld [vmem:[%s2 + $0x1b0] sm:$0xff]
  %v442 = vld [vmem:[%s2 + $0x1b8] sm:$0xff]
  %v443 = vld [vmem:[%s2 + $0x1c0] sm:$0xff]
  %v444 = vld [vmem:[%s2 + $0x1c8] sm:$0xff]
  %v445 = vld [vmem:[%s2 + $0x1d0] sm:$0xff]
  %v446 = vld [vmem:[%s2 + $0x1d8] sm:$0xff]
  %v447 = vld [vmem:[%s2 + $0x1e0] sm:$0xff]
  %v448 = vld [vmem:[%s2 + $0x1e8] sm:$0xff]
  %v449 = vld [vmem:[%s2 + $0x1f0] sm:$0xff]
  %v450 = vld [vmem:[%s2 + $0x1f8] sm:$0xff]
  %v451 = vld [vmem:[%s2 + $0x200] sm:$0xff]
  %v452 = vld [vmem:[%s2 + $0x208] sm:$0xff]
  %v453 = vld [vmem:[%s2 + $0x210] sm:$0xff]
  %v454 = vld [vmem:[%s2 + $0x218] sm:$0xff]
  %v455 = vld [vmem:[%s2 + $0x220] sm:$0xff]
  %v456 = vld [vmem:[%s2 + $0x228] sm:$0xff]
  %v457 = vld [vmem:[%s2 + $0x230] sm:$0xff]
  %v458 = vld [vmem:[%s2 + $0x238] sm:$0xff]
  %v459 = vld [vmem:[%s2 + $0x240] sm:$0xff]
  %v460 = vld [vmem:[%s2 + $0x248] sm:$0xff]
  %v461 = vld [vmem:[%s2 + $0x250] sm:$0xff]
  %v462 = vld [vmem:[%s2 + $0x258] sm:$0xff]
  %v463 = vld [vmem:[%s2 + $0x260] sm:$0xff]
  %v464 = vld [vmem:[%s2 + $0x268] sm:$0xff]
  %v465 = vld [vmem:[%s2 + $0x270] sm:$0xff]
  %v466 = vld [vmem:[%s2 + $0x278] sm:$0xff]
  %v467 = vld [vmem:[%s2 + $0x280] sm:$0xff]
  %v468 = vld [vmem:[%s2 + $0x288] sm:$0xff]
  %v469 = vld [vmem:[%s2 + $0x290] sm:$0xff]
  %v470 = vld [vmem:[%s2 + $0x298] sm:$0xff]
  %v471 = vld [vmem:[%s2 + $0x2a0] sm:$0xff]
  %v472 = vld [vmem:[%s2 + $0x2a8] sm:$0xff]
  %v473 = vld [vmem:[%s2 + $0x2b0] sm:$0xff]
  %v474 = vld [vmem:[%s2 + $0x2b8] sm:$0xff]
  %v475 = vld [vmem:[%s2 + $0x2c0] sm:$0xff]
  %v476 = vld [vmem:[%s2 + $0x2c8] sm:$0xff]
  %v477 = vld [vmem:[%s2 + $0x2d0] sm:$0xff]
  %v478 = vld [vmem:[%s2 + $0x2d8] sm:$0xff]
  %v479 = vld [vmem:[%s2 + $0x2e0] sm:$0xff]
  %v480 = vld [vmem:[%s2 + $0x2e8] sm:$0xff]
  %v481 = vld [vmem:[%s2 + $0x2f0] sm:$0xff]
  %v482 = vld [vmem:[%s2 + $0x2f8] sm:$0xff]
  %v483 = vld [vmem:[%s2 + $0x300] sm:$0xff]
  %v484 = vld [vmem:[%s2 + $0x308] sm:$0xff]
  %v485 = vld [vmem:[%s2 + $0x310] sm:$0xff]
  %v486 = vld [vmem:[%s2 + $0x318] sm:$0xff]
  %v487 = vld [vmem:[%s2 + $0x320] sm:$0xff]
  %v488 = vld [vmem:[%s2 + $0x328] sm:$0xff]
  %v489 = vld [vmem:[%s2 + $0x330] sm:$0xff]
  %v490 = vld [vmem:[%s2 + $0x338] sm:$0xff]
  %v491 = vld [vmem:[%s2 + $0x340] sm:$0xff]
  %v492 = vld [vmem:[%s2 + $0x348] sm:$0xff]
  %v493 = vld [vmem:[%s2 + $0x350] sm:$0xff]
  %v494 = vld [vmem:[%s2 + $0x358] sm:$0xff]
  %v495 = vld [vmem:[%s2 + $0x360] sm:$0xff]
  %v496 = vld [vmem:[%s2 + $0x368] sm:$0xff]
  %v497 = vld [vmem:[%s2 + $0x370] sm:$0xff]
  %v498 = vld [vmem:[%s2 + $0x378] sm:$0xff]
  %v499 = vld [vmem:[%s2 + $0x380] sm:$0xff]
  %v500 = vld [vmem:[%s2 + $0x388] sm:$0xff]
  %v501 = vld [vmem:[%s2 + $0x390] sm:$0xff]
  %v502 = vld [vmem:[%s2 + $0x398] sm:$0xff]
  %v503 = vld [vmem:[%s2 + $0x3a0] sm:$0xff]
  %v504 = vld [vmem:[%s2 + $0x3a8] sm:$0xff]
  %v505 = vld [vmem:[%s2 + $0x3b0] sm:$0xff]
  %v506 = vld [vmem:[%s2 + $0x3b8] sm:$0xff]
  %v507 = vld [vmem:[%s2 + $0x3c0] sm:$0xff]
  %v508 = vld [vmem:[%s2 + $0x3c8] sm:$0xff]
  %v509 = vld [vmem:[%s2 + $0x3d0] sm:$0xff]
  %v510 = vld [vmem:[%s2 + $0x3d8] sm:$0xff]
  %v511 = vld [vmem:[%s2 + $0x3e0] sm:$0xff]
  %v512 = vld [vmem:[%s2 + $0x3e8] sm:$0xff]
  %v513 = vld [vmem:[%s2 + $0x3f0] sm:$0xff]
  %v514 = vld [vmem:[%s2 + $0x3f8] sm:$0xff]
  %v515 = vld [vmem:[%s2 + $0x400] sm:$0xff]
  %v516 = vld [vmem:[%s2 + $0x408] sm:$0xff]
  %v517 = vld [vmem:[%s2 + $0x410] sm:$0xff]
  %v518 = vld [vmem:[%s2 + $0x418] sm:$0xff]
  %v519 = vld [vmem:[%s2 + $0x420] sm:$0xff]
  %v520 = vld [vmem:[%s2 + $0x428] sm:$0xff]
  %v521 = vld [vmem:[%s2 + $0x430] sm:$0xff]
  %v522 = vld [vmem:[%s2 + $0x438] sm:$0xff]
  %v523 = vld [vmem:[%s2 + $0x440] sm:$0xff]
  %v524 = vld [vmem:[%s2 + $0x448] sm:$0xff]
  %v525 = vld [vmem:[%s2 + $0x450] sm:$0xff]
  %v526 = vld [vmem:[%s2 + $0x458] sm:$0xff]
  %v527 = vld [vmem:[%s2 + $0x460] sm:$0xff]
  %v528 = vld [vmem:[%s2 + $0x468] sm:$0xff]
  %v529 = vld [vmem:[%s2 + $0x470] sm:$0xff]
  %v530 = vld [vmem:[%s2 + $0x478] sm:$0xff]
  %v531 = vld [vmem:[%s2 + $0x480] sm:$0xff]
  %v532 = vld [vmem:[%s2 + $0x488] sm:$0xff]
  %v533 = vld [vmem:[%s2 + $0x490] sm:$0xff]
  %v534 = vld [vmem:[%s2 + $0x498] sm:$0xff]
  %v535 = vld [vmem:[%s2 + $0x4a0] sm:$0xff]
  %v536 = vld [vmem:[%s2 + $0x4a8] sm:$0xff]
  %v537 = vld [vmem:[%s2 + $0x4b0] sm:$0xff]
  %v538 = vld [vmem:[%s2 + $0x4b8] sm:$0xff]
  %v539 = vld [vmem:[%s2 + $0x4c0] sm:$0xff]
  %v540 = vld [vmem:[%s2 + $0x4c8] sm:$0xff]
  %v541 = vld [vmem:[%s2 + $0x4d0] sm:$0xff]
  %v542 = vld [vmem:[%s2 + $0x4d8] sm:$0xff]
  %v543 = vld [vmem:[%s2 + $0x4e0] sm:$0xff]
  %v544 = vld [vmem:[%s2 + $0x4e8] sm:$0xff]
  %v545 = vld [vmem:[%s2 + $0x4f0] sm:$0xff]
  %v546 = vld [vmem:[%s2 + $0x4f8] sm:$0xff]
  %v547 = vld [vmem:[%s2 + $0x500] sm:$0xff]
  %v548 = vld [vmem:[%s2 + $0x508] sm:$0xff]
  %v549 = vld [vmem:[%s2 + $0x510] sm:$0xff]
  %v550 = vld [vmem:[%s2 + $0x518] sm:$0xff]
  %v551 = vld [vmem:[%s2 + $0x520] sm:$0xff]
  %v552 = vld [vmem:[%s2 + $0x528] sm:$0xff]
  %v553 = vld [vmem:[%s2 + $0x530] sm:$0xff]
  %v554 = vld [vmem:[%s2 + $0x538] sm:$0xff]
  %v555 = vld [vmem:[%s2 + $0x540] sm:$0xff]
  %v556 = vld [vmem:[%s2 + $0x548] sm:$0xff]
  %v557 = vld [vmem:[%s2 + $0x550] sm:$0xff]
  %v558 = vld [vmem:[%s2 + $0x558] sm:$0xff]
  %v559 = vld [vmem:[%s2 + $0x560] sm:$0xff]
  %v560 = vld [vmem:[%s2 + $0x568] sm:$0xff]
  %v561 = vld [vmem:[%s2 + $0x570] sm:$0xff]
  %v562 = vld [vmem:[%s2 + $0x578] sm:$0xff]
  %v563 = vld [vmem:[%s2 + $0x580] sm:$0xff]
  %v564 = vld [vmem:[%s2 + $0x588] sm:$0xff]
  %v565 = vld [vmem:[%s2 + $0x590] sm:$0xff]
  %v566 = vld [vmem:[%s2 + $0x598] sm:$0xff]
  %v567 = vld [vmem:[%s2 + $0x5a0] sm:$0xff]
  %v568 = vld [vmem:[%s2 + $0x5a8] sm:$0xff]
  %v569 = vld [vmem:[%s2 + $0x5b0] sm:$0xff]
  %v570 = vld [vmem:[%s2 + $0x5b8] sm:$0xff]
  %v571 = vld [vmem:[%s2 + $0x5c0] sm:$0xff]
  %v572 = vld [vmem:[%s2 + $0x5c8] sm:$0xff]
  %v573 = vld [vmem:[%s2 + $0x5d0] sm:$0xff]
  %v574 = vld [vmem:[%s2 + $0x5d8] sm:$0xff]
  %v575 = vld [vmem:[%s2 + $0x5e0] sm:$0xff]
  %v576 = vld [vmem:[%s2 + $0x5e8] sm:$0xff]
  %v577 = vld [vmem:[%s2 + $0x5f0] sm:$0xff]
  %v578 = vld [vmem:[%s2 + $0x5f8] sm:$0xff]
  %v579 = vld [vmem:[%s2 + $0x600] sm:$0xff]
  %v580 = vld [vmem:[%s2 + $0x608] sm:$0xff]
  %v581 = vld [vmem:[%s2 + $0x610] sm:$0xff]
  %v582 = vld [vmem:[%s2 + $0x618] sm:$0xff]
  %v583 = vld [vmem:[%s2 + $0x620] sm:$0xff]
  %v584 = vld [vmem:[%s2 + $0x628] sm:$0xff]
  %v585 = vld [vmem:[%s2 + $0x630] sm:$0xff]
  %v586 = vld [vmem:[%s2 + $0x638] sm:$0xff]
  %v587 = vld [vmem:[%s2 + $0x640] sm:$0xff]
  %v588 = vld [vmem:[%s2 + $0x648] sm:$0xff]
  %v589 = vld [vmem:[%s2 + $0x650] sm:$0xff]
  %v590 = vld [vmem:[%s2 + $0x658] sm:$0xff]
  %v591 = vld [vmem:[%s2 + $0x660] sm:$0xff]
  %v592 = vld [vmem:[%s2 + $0x668] sm:$0xff]
  %v593 = vld [vmem:[%s2 + $0x670] sm:$0xff]
  %v594 = vld [vmem:[%s2 + $0x678] sm:$0xff]
  %v595 = vld [vmem:[%s2 + $0x680] sm:$0xff]
  %v596 = vld [vmem:[%s2 + $0x688] sm:$0xff]
  %v597 = vld [vmem:[%s2 + $0x690] sm:$0xff]
  %v598 = vld [vmem:[%s2 + $0x698] sm:$0xff]
  %v599 = vld [vmem:[%s2 + $0x6a0] sm:$0xff]
  %v600 = vld [vmem:[%s2 + $0x6a8] sm:$0xff]
  %v601 = vld [vmem:[%s2 + $0x6b0] sm:$0xff]
  %v602 = vld [vmem:[%s2 + $0x6b8] sm:$0xff]
  %v603 = vld [vmem:[%s2 + $0x6c0] sm:$0xff]
  %v604 = vld [vmem:[%s2 + $0x6c8] sm:$0xff]
  %v605 = vld [vmem:[%s2 + $0x6d0] sm:$0xff]
  %v606 = vld [vmem:[%s2 + $0x6d8] sm:$0xff]
  %v607 = vld [vmem:[%s2 + $0x6e0] sm:$0xff]
  %v608 = vld [vmem:[%s2 + $0x6e8] sm:$0xff]
  %v609 = vld [vmem:[%s2 + $0x6f0] sm:$0xff]
  %v610 = vld [vmem:[%s2 + $0x6f8] sm:$0xff]
  %v611 = vld [vmem:[%s2 + $0x700] sm:$0xff]
  %v612 = vld [vmem:[%s2 + $0x708] sm:$0xff]
  %v613 = vld [vmem:[%s2 + $0x710] sm:$0xff]
  %v614 = vld [vmem:[%s2 + $0x718] sm:$0xff]
  %v615 = vld [vmem:[%s2 + $0x720] sm:$0xff]
  %v616 = vld [vmem:[%s2 + $0x728] sm:$0xff]
  %v617 = vld [vmem:[%s2 + $0x730] sm:$0xff]
  %v618 = vld [vmem:[%s2 + $0x738] sm:$0xff]
  %v619 = vld [vmem:[%s2 + $0x740] sm:$0xff]
  %v620 = vld [vmem:[%s2 + $0x748] sm:$0xff]
  %v621 = vld [vmem:[%s2 + $0x750] sm:$0xff]
  %v622 = vld [vmem:[%s2 + $0x758] sm:$0xff]
  %v623 = vld [vmem:[%s2 + $0x760] sm:$0xff]
  %v624 = vld [vmem:[%s2 + $0x768] sm:$0xff]
  %v625 = vld [vmem:[%s2 + $0x770] sm:$0xff]
  %v626 = vld [vmem:[%s2 + $0x778] sm:$0xff]
  %v627 = vld [vmem:[%s2 + $0x780] sm:$0xff]
  %v628 = vld [vmem:[%s2 + $0x788] sm:$0xff]
  %v629 = vld [vmem:[%s2 + $0x790] sm:$0xff]
  %v630 = vld [vmem:[%s2 + $0x798] sm:$0xff]
  %v631 = vld [vmem:[%s2 + $0x7a0] sm:$0xff]
  %v632 = vld [vmem:[%s2 + $0x7a8] sm:$0xff]
  %v633 = vld [vmem:[%s2 + $0x7b0] sm:$0xff]
  %v634 = vld [vmem:[%s2 + $0x7b8] sm:$0xff]
  %v635 = vld [vmem:[%s2 + $0x7c0] sm:$0xff]
  %v636 = vld [vmem:[%s2 + $0x7c8] sm:$0xff]
  %v637 = vld [vmem:[%s2 + $0x7d0] sm:$0xff]
  %v638 = vld [vmem:[%s2 + $0x7d8] sm:$0xff]
  %v639 = vld [vmem:[%s2 + $0x7e0] sm:$0xff]
  %v640 = vld [vmem:[%s2 + $0x7e8] sm:$0xff]
  %v641 = vld [vmem:[%s2 + $0x7f0] sm:$0xff]
  %v642 = vld [vmem:[%s2 + $0x7f8] sm:$0xff]
  %v643 = vld [vmem:[%s3] sm:$0xff]
  %v645 = vlaneseq
  %v646 = vshrl.u32 %v645, 7
  %v647 = vsub.s32 0, %v646
  %v648 = vrot.slane %v643, %v647
  %v649 = vlaneseq
  %v650 = vshrl.u32 %v649, 7
  %v651 = vsub.s32 1, %v650
  %v652 = vrot.slane %v643, %v651
  %v653 = vlaneseq
  %v654 = vshrl.u32 %v653, 7
  %v655 = vsub.s32 2, %v654
  %v656 = vrot.slane %v643, %v655
  %v657 = vlaneseq
  %v658 = vshrl.u32 %v657, 7
  %v659 = vsub.s32 3, %v658
  %v660 = vrot.slane %v643, %v659
  %v661 = vlaneseq
  %v662 = vshrl.u32 %v661, 7
  %v663 = vsub.s32 4, %v662
  %v664 = vrot.slane %v643, %v663
  %v665 = vlaneseq
  %v666 = vshrl.u32 %v665, 7
  %v667 = vsub.s32 5, %v666
  %v668 = vrot.slane %v643, %v667
  %v669 = vlaneseq
  %v670 = vshrl.u32 %v669, 7
  %v671 = vsub.s32 6, %v670
  %v672 = vrot.slane %v643, %v671
  %v673 = vlaneseq
  %v674 = vshrl.u32 %v673, 7
  %v675 = vsub.s32 7, %v674
  %v676 = vrot.slane %v643, %v675
  %v941 = vunpack.c.l.b16 %v387
  %v942 = vunpack.c.h.b16 %v387
  %v943 = vunpack.c.l.b16 %v388
  %v944 = vunpack.c.h.b16 %v388
  %v945 = vunpack.c.l.b16 %v389
  %v946 = vunpack.c.h.b16 %v389
  %v947 = vunpack.c.l.b16 %v390
  %v948 = vunpack.c.h.b16 %v390
  %v949 = vunpack.c.l.b16 %v391
  %v950 = vunpack.c.h.b16 %v391
  %v951 = vunpack.c.l.b16 %v392
  %v952 = vunpack.c.h.b16 %v392
  %v953 = vunpack.c.l.b16 %v393
  %v954 = vunpack.c.h.b16 %v393
  %v955 = vunpack.c.l.b16 %v394
  %v956 = vunpack.c.h.b16 %v394
  %v957 = vunpack.c.l.b16 %v395
  %v958 = vunpack.c.h.b16 %v395
  %v959 = vunpack.c.l.b16 %v396
  %v960 = vunpack.c.h.b16 %v396
  %v961 = vunpack.c.l.b16 %v397
  %v962 = vunpack.c.h.b16 %v397
  %v963 = vunpack.c.l.b16 %v398
  %v964 = vunpack.c.h.b16 %v398
  %v965 = vunpack.c.l.b16 %v399
  %v966 = vunpack.c.h.b16 %v399
  %v967 = vunpack.c.l.b16 %v400
  %v968 = vunpack.c.h.b16 %v400
  %v969 = vunpack.c.l.b16 %v401
  %v970 = vunpack.c.h.b16 %v401
  %v971 = vunpack.c.l.b16 %v402
  %v972 = vunpack.c.h.b16 %v402
  %v973 = vunpack.c.l.b16 %v403
  %v974 = vunpack.c.h.b16 %v403
  %v975 = vunpack.c.l.b16 %v404
  %v976 = vunpack.c.h.b16 %v404
  %v977 = vunpack.c.l.b16 %v405
  %v978 = vunpack.c.h.b16 %v405
  %v979 = vunpack.c.l.b16 %v406
  %v980 = vunpack.c.h.b16 %v406
  %v981 = vunpack.c.l.b16 %v407
  %v982 = vunpack.c.h.b16 %v407
  %v983 = vunpack.c.l.b16 %v408
  %v984 = vunpack.c.h.b16 %v408
  %v985 = vunpack.c.l.b16 %v409
  %v986 = vunpack.c.h.b16 %v409
  %v987 = vunpack.c.l.b16 %v410
  %v988 = vunpack.c.h.b16 %v410
  %v989 = vunpack.c.l.b16 %v411
  %v990 = vunpack.c.h.b16 %v411
  %v991 = vunpack.c.l.b16 %v412
  %v992 = vunpack.c.h.b16 %v412
  %v993 = vunpack.c.l.b16 %v413
  %v994 = vunpack.c.h.b16 %v413
  %v995 = vunpack.c.l.b16 %v414
  %v996 = vunpack.c.h.b16 %v414
  %v997 = vunpack.c.l.b16 %v415
  %v998 = vunpack.c.h.b16 %v415
  %v999 = vunpack.c.l.b16 %v416
  %v1000 = vunpack.c.h.b16 %v416
  %v1001 = vunpack.c.l.b16 %v417
  %v1002 = vunpack.c.h.b16 %v417
  %v1003 = vunpack.c.l.b16 %v418
  %v1004 = vunpack.c.h.b16 %v418
  %v1005 = vunpack.c.l.b16 %v419
  %v1006 = vunpack.c.h.b16 %v419
  %v1007 = vunpack.c.l.b16 %v420
  %v1008 = vunpack.c.h.b16 %v420
  %v1009 = vunpack.c.l.b16 %v421
  %v1010 = vunpack.c.h.b16 %v421
  %v1011 = vunpack.c.l.b16 %v422
  %v1012 = vunpack.c.h.b16 %v422
  %v1013 = vunpack.c.l.b16 %v423
  %v1014 = vunpack.c.h.b16 %v423
  %v1015 = vunpack.c.l.b16 %v424
  %v1016 = vunpack.c.h.b16 %v424
  %v1017 = vunpack.c.l.b16 %v425
  %v1018 = vunpack.c.h.b16 %v425
  %v1019 = vunpack.c.l.b16 %v426
  %v1020 = vunpack.c.h.b16 %v426
  %v1021 = vunpack.c.l.b16 %v427
  %v1022 = vunpack.c.h.b16 %v427
  %v1023 = vunpack.c.l.b16 %v428
  %v1024 = vunpack.c.h.b16 %v428
  %v1025 = vunpack.c.l.b16 %v429
  %v1026 = vunpack.c.h.b16 %v429
  %v1027 = vunpack.c.l.b16 %v430
  %v1028 = vunpack.c.h.b16 %v430
  %v1029 = vunpack.c.l.b16 %v431
  %v1030 = vunpack.c.h.b16 %v431
  %v1031 = vunpack.c.l.b16 %v432
  %v1032 = vunpack.c.h.b16 %v432
  %v1033 = vunpack.c.l.b16 %v433
  %v1034 = vunpack.c.h.b16 %v433
  %v1035 = vunpack.c.l.b16 %v434
  %v1036 = vunpack.c.h.b16 %v434
  %v1037 = vunpack.c.l.b16 %v435
  %v1038 = vunpack.c.h.b16 %v435
  %v1039 = vunpack.c.l.b16 %v436
  %v1040 = vunpack.c.h.b16 %v436
  %v1041 = vunpack.c.l.b16 %v437
  %v1042 = vunpack.c.h.b16 %v437
  %v1043 = vunpack.c.l.b16 %v438
  %v1044 = vunpack.c.h.b16 %v438
  %v1045 = vunpack.c.l.b16 %v439
  %v1046 = vunpack.c.h.b16 %v439
  %v1047 = vunpack.c.l.b16 %v440
  %v1048 = vunpack.c.h.b16 %v440
  %v1049 = vunpack.c.l.b16 %v441
  %v1050 = vunpack.c.h.b16 %v441
  %v1051 = vunpack.c.l.b16 %v442
  %v1052 = vunpack.c.h.b16 %v442
  %v1053 = vunpack.c.l.b16 %v443
  %v1054 = vunpack.c.h.b16 %v443
  %v1055 = vunpack.c.l.b16 %v444
  %v1056 = vunpack.c.h.b16 %v444
  %v1057 = vunpack.c.l.b16 %v445
  %v1058 = vunpack.c.h.b16 %v445
  %v1059 = vunpack.c.l.b16 %v446
  %v1060 = vunpack.c.h.b16 %v446
  %v1061 = vunpack.c.l.b16 %v447
  %v1062 = vunpack.c.h.b16 %v447
  %v1063 = vunpack.c.l.b16 %v448
  %v1064 = vunpack.c.h.b16 %v448
  %v1065 = vunpack.c.l.b16 %v449
  %v1066 = vunpack.c.h.b16 %v449
  %v1067 = vunpack.c.l.b16 %v450
  %v1068 = vunpack.c.h.b16 %v450
  %v1069 = vunpack.c.l.b16 %v451
  %v1070 = vunpack.c.h.b16 %v451
  %v1071 = vunpack.c.l.b16 %v452
  %v1072 = vunpack.c.h.b16 %v452
  %v1073 = vunpack.c.l.b16 %v453
  %v1074 = vunpack.c.h.b16 %v453
  %v1075 = vunpack.c.l.b16 %v454
  %v1076 = vunpack.c.h.b16 %v454
  %v1077 = vunpack.c.l.b16 %v455
  %v1078 = vunpack.c.h.b16 %v455
  %v1079 = vunpack.c.l.b16 %v456
  %v1080 = vunpack.c.h.b16 %v456
  %v1081 = vunpack.c.l.b16 %v457
  %v1082 = vunpack.c.h.b16 %v457
  %v1083 = vunpack.c.l.b16 %v458
  %v1084 = vunpack.c.h.b16 %v458
  %v1085 = vunpack.c.l.b16 %v459
  %v1086 = vunpack.c.h.b16 %v459
  %v1087 = vunpack.c.l.b16 %v460
  %v1088 = vunpack.c.h.b16 %v460
  %v1089 = vunpack.c.l.b16 %v461
  %v1090 = vunpack.c.h.b16 %v461
  %v1091 = vunpack.c.l.b16 %v462
  %v1092 = vunpack.c.h.b16 %v462
  %v1093 = vunpack.c.l.b16 %v463
  %v1094 = vunpack.c.h.b16 %v463
  %v1095 = vunpack.c.l.b16 %v464
  %v1096 = vunpack.c.h.b16 %v464
  %v1097 = vunpack.c.l.b16 %v465
  %v1098 = vunpack.c.h.b16 %v465
  %v1099 = vunpack.c.l.b16 %v466
  %v1100 = vunpack.c.h.b16 %v466
  %v1101 = vunpack.c.l.b16 %v467
  %v1102 = vunpack.c.h.b16 %v467
  %v1103 = vunpack.c.l.b16 %v468
  %v1104 = vunpack.c.h.b16 %v468
  %v1105 = vunpack.c.l.b16 %v469
  %v1106 = vunpack.c.h.b16 %v469
  %v1107 = vunpack.c.l.b16 %v470
  %v1108 = vunpack.c.h.b16 %v470
  %v1109 = vunpack.c.l.b16 %v471
  %v1110 = vunpack.c.h.b16 %v471
  %v1111 = vunpack.c.l.b16 %v472
  %v1112 = vunpack.c.h.b16 %v472
  %v1113 = vunpack.c.l.b16 %v473
  %v1114 = vunpack.c.h.b16 %v473
  %v1115 = vunpack.c.l.b16 %v474
  %v1116 = vunpack.c.h.b16 %v474
  %v1117 = vunpack.c.l.b16 %v475
  %v1118 = vunpack.c.h.b16 %v475
  %v1119 = vunpack.c.l.b16 %v476
  %v1120 = vunpack.c.h.b16 %v476
  %v1121 = vunpack.c.l.b16 %v477
  %v1122 = vunpack.c.h.b16 %v477
  %v1123 = vunpack.c.l.b16 %v478
  %v1124 = vunpack.c.h.b16 %v478
  %v1125 = vunpack.c.l.b16 %v479
  %v1126 = vunpack.c.h.b16 %v479
  %v1127 = vunpack.c.l.b16 %v480
  %v1128 = vunpack.c.h.b16 %v480
  %v1129 = vunpack.c.l.b16 %v481
  %v1130 = vunpack.c.h.b16 %v481
  %v1131 = vunpack.c.l.b16 %v482
  %v1132 = vunpack.c.h.b16 %v482
  %v1133 = vunpack.c.l.b16 %v483
  %v1134 = vunpack.c.h.b16 %v483
  %v1135 = vunpack.c.l.b16 %v484
  %v1136 = vunpack.c.h.b16 %v484
  %v1137 = vunpack.c.l.b16 %v485
  %v1138 = vunpack.c.h.b16 %v485
  %v1139 = vunpack.c.l.b16 %v486
  %v1140 = vunpack.c.h.b16 %v486
  %v1141 = vunpack.c.l.b16 %v487
  %v1142 = vunpack.c.h.b16 %v487
  %v1143 = vunpack.c.l.b16 %v488
  %v1144 = vunpack.c.h.b16 %v488
  %v1145 = vunpack.c.l.b16 %v489
  %v1146 = vunpack.c.h.b16 %v489
  %v1147 = vunpack.c.l.b16 %v490
  %v1148 = vunpack.c.h.b16 %v490
  %v1149 = vunpack.c.l.b16 %v491
  %v1150 = vunpack.c.h.b16 %v491
  %v1151 = vunpack.c.l.b16 %v492
  %v1152 = vunpack.c.h.b16 %v492
  %v1153 = vunpack.c.l.b16 %v493
  %v1154 = vunpack.c.h.b16 %v493
  %v1155 = vunpack.c.l.b16 %v494
  %v1156 = vunpack.c.h.b16 %v494
  %v1157 = vunpack.c.l.b16 %v495
  %v1158 = vunpack.c.h.b16 %v495
  %v1159 = vunpack.c.l.b16 %v496
  %v1160 = vunpack.c.h.b16 %v496
  %v1161 = vunpack.c.l.b16 %v497
  %v1162 = vunpack.c.h.b16 %v497
  %v1163 = vunpack.c.l.b16 %v498
  %v1164 = vunpack.c.h.b16 %v498
  %v1165 = vunpack.c.l.b16 %v499
  %v1166 = vunpack.c.h.b16 %v499
  %v1167 = vunpack.c.l.b16 %v500
  %v1168 = vunpack.c.h.b16 %v500
  %v1169 = vunpack.c.l.b16 %v501
  %v1170 = vunpack.c.h.b16 %v501
  %v1171 = vunpack.c.l.b16 %v502
  %v1172 = vunpack.c.h.b16 %v502
  %v1173 = vunpack.c.l.b16 %v503
  %v1174 = vunpack.c.h.b16 %v503
  %v1175 = vunpack.c.l.b16 %v504
  %v1176 = vunpack.c.h.b16 %v504
  %v1177 = vunpack.c.l.b16 %v505
  %v1178 = vunpack.c.h.b16 %v505
  %v1179 = vunpack.c.l.b16 %v506
  %v1180 = vunpack.c.h.b16 %v506
  %v1181 = vunpack.c.l.b16 %v507
  %v1182 = vunpack.c.h.b16 %v507
  %v1183 = vunpack.c.l.b16 %v508
  %v1184 = vunpack.c.h.b16 %v508
  %v1185 = vunpack.c.l.b16 %v509
  %v1186 = vunpack.c.h.b16 %v509
  %v1187 = vunpack.c.l.b16 %v510
  %v1188 = vunpack.c.h.b16 %v510
  %v1189 = vunpack.c.l.b16 %v511
  %v1190 = vunpack.c.h.b16 %v511
  %v1191 = vunpack.c.l.b16 %v512
  %v1192 = vunpack.c.h.b16 %v512
  %v1193 = vunpack.c.l.b16 %v513
  %v1194 = vunpack.c.h.b16 %v513
  %v1195 = vunpack.c.l.b16 %v514
  %v1196 = vunpack.c.h.b16 %v514
  %v1197 = vunpack.c.l.b16 %v515
  %v1198 = vunpack.c.h.b16 %v515
  %v1199 = vunpack.c.l.b16 %v516
  %v1200 = vunpack.c.h.b16 %v516
  %v1201 = vunpack.c.l.b16 %v517
  %v1202 = vunpack.c.h.b16 %v517
  %v1203 = vunpack.c.l.b16 %v518
  %v1204 = vunpack.c.h.b16 %v518
  %v1205 = vunpack.c.l.b16 %v519
  %v1206 = vunpack.c.h.b16 %v519
  %v1207 = vunpack.c.l.b16 %v520
  %v1208 = vunpack.c.h.b16 %v520
  %v1209 = vunpack.c.l.b16 %v521
  %v1210 = vunpack.c.h.b16 %v521
  %v1211 = vunpack.c.l.b16 %v522
  %v1212 = vunpack.c.h.b16 %v522
  %v1213 = vunpack.c.l.b16 %v523
  %v1214 = vunpack.c.h.b16 %v523
  %v1215 = vunpack.c.l.b16 %v524
  %v1216 = vunpack.c.h.b16 %v524
  %v1217 = vunpack.c.l.b16 %v525
  %v1218 = vunpack.c.h.b16 %v525
  %v1219 = vunpack.c.l.b16 %v526
  %v1220 = vunpack.c.h.b16 %v526
  %v1221 = vunpack.c.l.b16 %v527
  %v1222 = vunpack.c.h.b16 %v527
  %v1223 = vunpack.c.l.b16 %v528
  %v1224 = vunpack.c.h.b16 %v528
  %v1225 = vunpack.c.l.b16 %v529
  %v1226 = vunpack.c.h.b16 %v529
  %v1227 = vunpack.c.l.b16 %v530
  %v1228 = vunpack.c.h.b16 %v530
  %v1229 = vunpack.c.l.b16 %v531
  %v1230 = vunpack.c.h.b16 %v531
  %v1231 = vunpack.c.l.b16 %v532
  %v1232 = vunpack.c.h.b16 %v532
  %v1233 = vunpack.c.l.b16 %v533
  %v1234 = vunpack.c.h.b16 %v533
  %v1235 = vunpack.c.l.b16 %v534
  %v1236 = vunpack.c.h.b16 %v534
  %v1237 = vunpack.c.l.b16 %v535
  %v1238 = vunpack.c.h.b16 %v535
  %v1239 = vunpack.c.l.b16 %v536
  %v1240 = vunpack.c.h.b16 %v536
  %v1241 = vunpack.c.l.b16 %v537
  %v1242 = vunpack.c.h.b16 %v537
  %v1243 = vunpack.c.l.b16 %v538
  %v1244 = vunpack.c.h.b16 %v538
  %v1245 = vunpack.c.l.b16 %v539
  %v1246 = vunpack.c.h.b16 %v539
  %v1247 = vunpack.c.l.b16 %v540
  %v1248 = vunpack.c.h.b16 %v540
  %v1249 = vunpack.c.l.b16 %v541
  %v1250 = vunpack.c.h.b16 %v541
  %v1251 = vunpack.c.l.b16 %v542
  %v1252 = vunpack.c.h.b16 %v542
  %v1253 = vunpack.c.l.b16 %v543
  %v1254 = vunpack.c.h.b16 %v543
  %v1255 = vunpack.c.l.b16 %v544
  %v1256 = vunpack.c.h.b16 %v544
  %v1257 = vunpack.c.l.b16 %v545
  %v1258 = vunpack.c.h.b16 %v545
  %v1259 = vunpack.c.l.b16 %v546
  %v1260 = vunpack.c.h.b16 %v546
  %v1261 = vunpack.c.l.b16 %v547
  %v1262 = vunpack.c.h.b16 %v547
  %v1263 = vunpack.c.l.b16 %v548
  %v1264 = vunpack.c.h.b16 %v548
  %v1265 = vunpack.c.l.b16 %v549
  %v1266 = vunpack.c.h.b16 %v549
  %v1267 = vunpack.c.l.b16 %v550
  %v1268 = vunpack.c.h.b16 %v550
  %v1269 = vunpack.c.l.b16 %v551
  %v1270 = vunpack.c.h.b16 %v551
  %v1271 = vunpack.c.l.b16 %v552
  %v1272 = vunpack.c.h.b16 %v552
  %v1273 = vunpack.c.l.b16 %v553
  %v1274 = vunpack.c.h.b16 %v553
  %v1275 = vunpack.c.l.b16 %v554
  %v1276 = vunpack.c.h.b16 %v554
  %v1277 = vunpack.c.l.b16 %v555
  %v1278 = vunpack.c.h.b16 %v555
  %v1279 = vunpack.c.l.b16 %v556
  %v1280 = vunpack.c.h.b16 %v556
  %v1281 = vunpack.c.l.b16 %v557
  %v1282 = vunpack.c.h.b16 %v557
  %v1283 = vunpack.c.l.b16 %v558
  %v1284 = vunpack.c.h.b16 %v558
  %v1285 = vunpack.c.l.b16 %v559
  %v1286 = vunpack.c.h.b16 %v559
  %v1287 = vunpack.c.l.b16 %v560
  %v1288 = vunpack.c.h.b16 %v560
  %v1289 = vunpack.c.l.b16 %v561
  %v1290 = vunpack.c.h.b16 %v561
  %v1291 = vunpack.c.l.b16 %v562
  %v1292 = vunpack.c.h.b16 %v562
  %v1293 = vunpack.c.l.b16 %v563
  %v1294 = vunpack.c.h.b16 %v563
  %v1295 = vunpack.c.l.b16 %v564
  %v1296 = vunpack.c.h.b16 %v564
  %v1297 = vunpack.c.l.b16 %v565
  %v1298 = vunpack.c.h.b16 %v565
  %v1299 = vunpack.c.l.b16 %v566
  %v1300 = vunpack.c.h.b16 %v566
  %v1301 = vunpack.c.l.b16 %v567
  %v1302 = vunpack.c.h.b16 %v567
  %v1303 = vunpack.c.l.b16 %v568
  %v1304 = vunpack.c.h.b16 %v568
  %v1305 = vunpack.c.l.b16 %v569
  %v1306 = vunpack.c.h.b16 %v569
  %v1307 = vunpack.c.l.b16 %v570
  %v1308 = vunpack.c.h.b16 %v570
  %v1309 = vunpack.c.l.b16 %v571
  %v1310 = vunpack.c.h.b16 %v571
  %v1311 = vunpack.c.l.b16 %v572
  %v1312 = vunpack.c.h.b16 %v572
  %v1313 = vunpack.c.l.b16 %v573
  %v1314 = vunpack.c.h.b16 %v573
  %v1315 = vunpack.c.l.b16 %v574
  %v1316 = vunpack.c.h.b16 %v574
  %v1317 = vunpack.c.l.b16 %v575
  %v1318 = vunpack.c.h.b16 %v575
  %v1319 = vunpack.c.l.b16 %v576
  %v1320 = vunpack.c.h.b16 %v576
  %v1321 = vunpack.c.l.b16 %v577
  %v1322 = vunpack.c.h.b16 %v577
  %v1323 = vunpack.c.l.b16 %v578
  %v1324 = vunpack.c.h.b16 %v578
  %v1325 = vunpack.c.l.b16 %v579
  %v1326 = vunpack.c.h.b16 %v579
  %v1327 = vunpack.c.l.b16 %v580
  %v1328 = vunpack.c.h.b16 %v580
  %v1329 = vunpack.c.l.b16 %v581
  %v1330 = vunpack.c.h.b16 %v581
  %v1331 = vunpack.c.l.b16 %v582
  %v1332 = vunpack.c.h.b16 %v582
  %v1333 = vunpack.c.l.b16 %v583
  %v1334 = vunpack.c.h.b16 %v583
  %v1335 = vunpack.c.l.b16 %v584
  %v1336 = vunpack.c.h.b16 %v584
  %v1337 = vunpack.c.l.b16 %v585
  %v1338 = vunpack.c.h.b16 %v585
  %v1339 = vunpack.c.l.b16 %v586
  %v1340 = vunpack.c.h.b16 %v586
  %v1341 = vunpack.c.l.b16 %v587
  %v1342 = vunpack.c.h.b16 %v587
  %v1343 = vunpack.c.l.b16 %v588
  %v1344 = vunpack.c.h.b16 %v588
  %v1345 = vunpack.c.l.b16 %v589
  %v1346 = vunpack.c.h.b16 %v589
  %v1347 = vunpack.c.l.b16 %v590
  %v1348 = vunpack.c.h.b16 %v590
  %v1349 = vunpack.c.l.b16 %v591
  %v1350 = vunpack.c.h.b16 %v591
  %v1351 = vunpack.c.l.b16 %v592
  %v1352 = vunpack.c.h.b16 %v592
  %v1353 = vunpack.c.l.b16 %v593
  %v1354 = vunpack.c.h.b16 %v593
  %v1355 = vunpack.c.l.b16 %v594
  %v1356 = vunpack.c.h.b16 %v594
  %v1357 = vunpack.c.l.b16 %v595
  %v1358 = vunpack.c.h.b16 %v595
  %v1359 = vunpack.c.l.b16 %v596
  %v1360 = vunpack.c.h.b16 %v596
  %v1361 = vunpack.c.l.b16 %v597
  %v1362 = vunpack.c.h.b16 %v597
  %v1363 = vunpack.c.l.b16 %v598
  %v1364 = vunpack.c.h.b16 %v598
  %v1365 = vunpack.c.l.b16 %v599
  %v1366 = vunpack.c.h.b16 %v599
  %v1367 = vunpack.c.l.b16 %v600
  %v1368 = vunpack.c.h.b16 %v600
  %v1369 = vunpack.c.l.b16 %v601
  %v1370 = vunpack.c.h.b16 %v601
  %v1371 = vunpack.c.l.b16 %v602
  %v1372 = vunpack.c.h.b16 %v602
  %v1373 = vunpack.c.l.b16 %v603
  %v1374 = vunpack.c.h.b16 %v603
  %v1375 = vunpack.c.l.b16 %v604
  %v1376 = vunpack.c.h.b16 %v604
  %v1377 = vunpack.c.l.b16 %v605
  %v1378 = vunpack.c.h.b16 %v605
  %v1379 = vunpack.c.l.b16 %v606
  %v1380 = vunpack.c.h.b16 %v606
  %v1381 = vunpack.c.l.b16 %v607
  %v1382 = vunpack.c.h.b16 %v607
  %v1383 = vunpack.c.l.b16 %v608
  %v1384 = vunpack.c.h.b16 %v608
  %v1385 = vunpack.c.l.b16 %v609
  %v1386 = vunpack.c.h.b16 %v609
  %v1387 = vunpack.c.l.b16 %v610
  %v1388 = vunpack.c.h.b16 %v610
  %v1389 = vunpack.c.l.b16 %v611
  %v1390 = vunpack.c.h.b16 %v611
  %v1391 = vunpack.c.l.b16 %v612
  %v1392 = vunpack.c.h.b16 %v612
  %v1393 = vunpack.c.l.b16 %v613
  %v1394 = vunpack.c.h.b16 %v613
  %v1395 = vunpack.c.l.b16 %v614
  %v1396 = vunpack.c.h.b16 %v614
  %v1397 = vunpack.c.l.b16 %v615
  %v1398 = vunpack.c.h.b16 %v615
  %v1399 = vunpack.c.l.b16 %v616
  %v1400 = vunpack.c.h.b16 %v616
  %v1401 = vunpack.c.l.b16 %v617
  %v1402 = vunpack.c.h.b16 %v617
  %v1403 = vunpack.c.l.b16 %v618
  %v1404 = vunpack.c.h.b16 %v618
  %v1405 = vunpack.c.l.b16 %v619
  %v1406 = vunpack.c.h.b16 %v619
  %v1407 = vunpack.c.l.b16 %v620
  %v1408 = vunpack.c.h.b16 %v620
  %v1409 = vunpack.c.l.b16 %v621
  %v1410 = vunpack.c.h.b16 %v621
  %v1411 = vunpack.c.l.b16 %v622
  %v1412 = vunpack.c.h.b16 %v622
  %v1413 = vunpack.c.l.b16 %v623
  %v1414 = vunpack.c.h.b16 %v623
  %v1415 = vunpack.c.l.b16 %v624
  %v1416 = vunpack.c.h.b16 %v624
  %v1417 = vunpack.c.l.b16 %v625
  %v1418 = vunpack.c.h.b16 %v625
  %v1419 = vunpack.c.l.b16 %v626
  %v1420 = vunpack.c.h.b16 %v626
  %v1421 = vunpack.c.l.b16 %v627
  %v1422 = vunpack.c.h.b16 %v627
  %v1423 = vunpack.c.l.b16 %v628
  %v1424 = vunpack.c.h.b16 %v628
  %v1425 = vunpack.c.l.b16 %v629
  %v1426 = vunpack.c.h.b16 %v629
  %v1427 = vunpack.c.l.b16 %v630
  %v1428 = vunpack.c.h.b16 %v630
  %v1429 = vunpack.c.l.b16 %v631
  %v1430 = vunpack.c.h.b16 %v631
  %v1431 = vunpack.c.l.b16 %v632
  %v1432 = vunpack.c.h.b16 %v632
  %v1433 = vunpack.c.l.b16 %v633
  %v1434 = vunpack.c.h.b16 %v633
  %v1435 = vunpack.c.l.b16 %v634
  %v1436 = vunpack.c.h.b16 %v634
  %v1437 = vunpack.c.l.b16 %v635
  %v1438 = vunpack.c.h.b16 %v635
  %v1439 = vunpack.c.l.b16 %v636
  %v1440 = vunpack.c.h.b16 %v636
  %v1441 = vunpack.c.l.b16 %v637
  %v1442 = vunpack.c.h.b16 %v637
  %v1443 = vunpack.c.l.b16 %v638
  %v1444 = vunpack.c.h.b16 %v638
  %v1445 = vunpack.c.l.b16 %v639
  %v1446 = vunpack.c.h.b16 %v639
  %v1447 = vunpack.c.l.b16 %v640
  %v1448 = vunpack.c.h.b16 %v640
  %v1449 = vunpack.c.l.b16 %v641
  %v1450 = vunpack.c.h.b16 %v641
  %v1451 = vunpack.c.l.b16 %v642
  %v1452 = vunpack.c.h.b16 %v642
  %v1453 = vpack.c.b16 %v949, %v941
  %v1454 = vpack.c.b16 %v950, %v942
  %v1455 = vpack.c.b16 %v951, %v943
  %v1456 = vpack.c.b16 %v952, %v944
  %v1457 = vpack.c.b16 %v953, %v945
  %v1458 = vpack.c.b16 %v954, %v946
  %v1459 = vpack.c.b16 %v955, %v947
  %v1460 = vpack.c.b16 %v956, %v948
  %v1461 = vpack.c.b16 %v965, %v957
  %v1462 = vpack.c.b16 %v966, %v958
  %v1463 = vpack.c.b16 %v967, %v959
  %v1464 = vpack.c.b16 %v968, %v960
  %v1465 = vpack.c.b16 %v969, %v961
  %v1466 = vpack.c.b16 %v970, %v962
  %v1467 = vpack.c.b16 %v971, %v963
  %v1468 = vpack.c.b16 %v972, %v964
  %v1469 = vpack.c.b16 %v981, %v973
  %v1470 = vpack.c.b16 %v982, %v974
  %v1471 = vpack.c.b16 %v983, %v975
  %v1472 = vpack.c.b16 %v984, %v976
  %v1473 = vpack.c.b16 %v985, %v977
  %v1474 = vpack.c.b16 %v986, %v978
  %v1475 = vpack.c.b16 %v987, %v979
  %v1476 = vpack.c.b16 %v988, %v980
  %v1477 = vpack.c.b16 %v997, %v989
  %v1478 = vpack.c.b16 %v998, %v990
  %v1479 = vpack.c.b16 %v999, %v991
  %v1480 = vpack.c.b16 %v1000, %v992
  %v1481 = vpack.c.b16 %v1001, %v993
  %v1482 = vpack.c.b16 %v1002, %v994
  %v1483 = vpack.c.b16 %v1003, %v995
  %v1484 = vpack.c.b16 %v1004, %v996
  %v1485 = vpack.c.b16 %v1013, %v1005
  %v1486 = vpack.c.b16 %v1014, %v1006
  %v1487 = vpack.c.b16 %v1015, %v1007
  %v1488 = vpack.c.b16 %v1016, %v1008
  %v1489 = vpack.c.b16 %v1017, %v1009
  %v1490 = vpack.c.b16 %v1018, %v1010
  %v1491 = vpack.c.b16 %v1019, %v1011
  %v1492 = vpack.c.b16 %v1020, %v1012
  %v1493 = vpack.c.b16 %v1029, %v1021
  %v1494 = vpack.c.b16 %v1030, %v1022
  %v1495 = vpack.c.b16 %v1031, %v1023
  %v1496 = vpack.c.b16 %v1032, %v1024
  %v1497 = vpack.c.b16 %v1033, %v1025
  %v1498 = vpack.c.b16 %v1034, %v1026
  %v1499 = vpack.c.b16 %v1035, %v1027
  %v1500 = vpack.c.b16 %v1036, %v1028
  %v1501 = vpack.c.b16 %v1045, %v1037
  %v1502 = vpack.c.b16 %v1046, %v1038
  %v1503 = vpack.c.b16 %v1047, %v1039
  %v1504 = vpack.c.b16 %v1048, %v1040
  %v1505 = vpack.c.b16 %v1049, %v1041
  %v1506 = vpack.c.b16 %v1050, %v1042
  %v1507 = vpack.c.b16 %v1051, %v1043
  %v1508 = vpack.c.b16 %v1052, %v1044
  %v1509 = vpack.c.b16 %v1061, %v1053
  %v1510 = vpack.c.b16 %v1062, %v1054
  %v1511 = vpack.c.b16 %v1063, %v1055
  %v1512 = vpack.c.b16 %v1064, %v1056
  %v1513 = vpack.c.b16 %v1065, %v1057
  %v1514 = vpack.c.b16 %v1066, %v1058
  %v1515 = vpack.c.b16 %v1067, %v1059
  %v1516 = vpack.c.b16 %v1068, %v1060
  %v1517 = vpack.c.b16 %v1077, %v1069
  %v1518 = vpack.c.b16 %v1078, %v1070
  %v1519 = vpack.c.b16 %v1079, %v1071
  %v1520 = vpack.c.b16 %v1080, %v1072
  %v1521 = vpack.c.b16 %v1081, %v1073
  %v1522 = vpack.c.b16 %v1082, %v1074
  %v1523 = vpack.c.b16 %v1083, %v1075
  %v1524 = vpack.c.b16 %v1084, %v1076
  %v1525 = vpack.c.b16 %v1093, %v1085
  %v1526 = vpack.c.b16 %v1094, %v1086
  %v1527 = vpack.c.b16 %v1095, %v1087
  %v1528 = vpack.c.b16 %v1096, %v1088
  %v1529 = vpack.c.b16 %v1097, %v1089
  %v1530 = vpack.c.b16 %v1098, %v1090
  %v1531 = vpack.c.b16 %v1099, %v1091
  %v1532 = vpack.c.b16 %v1100, %v1092
  %v1533 = vpack.c.b16 %v1109, %v1101
  %v1534 = vpack.c.b16 %v1110, %v1102
  %v1535 = vpack.c.b16 %v1111, %v1103
  %v1536 = vpack.c.b16 %v1112, %v1104
  %v1537 = vpack.c.b16 %v1113, %v1105
  %v1538 = vpack.c.b16 %v1114, %v1106
  %v1539 = vpack.c.b16 %v1115, %v1107
  %v1540 = vpack.c.b16 %v1116, %v1108
  %v1541 = vpack.c.b16 %v1125, %v1117
  %v1542 = vpack.c.b16 %v1126, %v1118
  %v1543 = vpack.c.b16 %v1127, %v1119
  %v1544 = vpack.c.b16 %v1128, %v1120
  %v1545 = vpack.c.b16 %v1129, %v1121
  %v1546 = vpack.c.b16 %v1130, %v1122
  %v1547 = vpack.c.b16 %v1131, %v1123
  %v1548 = vpack.c.b16 %v1132, %v1124
  %v1549 = vpack.c.b16 %v1141, %v1133
  %v1550 = vpack.c.b16 %v1142, %v1134
  %v1551 = vpack.c.b16 %v1143, %v1135
  %v1552 = vpack.c.b16 %v1144, %v1136
  %v1553 = vpack.c.b16 %v1145, %v1137
  %v1554 = vpack.c.b16 %v1146, %v1138
  %v1555 = vpack.c.b16 %v1147, %v1139
  %v1556 = vpack.c.b16 %v1148, %v1140
  %v1557 = vpack.c.b16 %v1157, %v1149
  %v1558 = vpack.c.b16 %v1158, %v1150
  %v1559 = vpack.c.b16 %v1159, %v1151
  %v1560 = vpack.c.b16 %v1160, %v1152
  %v1561 = vpack.c.b16 %v1161, %v1153
  %v1562 = vpack.c.b16 %v1162, %v1154
  %v1563 = vpack.c.b16 %v1163, %v1155
  %v1564 = vpack.c.b16 %v1164, %v1156
  %v1565 = vpack.c.b16 %v1173, %v1165
  %v1566 = vpack.c.b16 %v1174, %v1166
  %v1567 = vpack.c.b16 %v1175, %v1167
  %v1568 = vpack.c.b16 %v1176, %v1168
  %v1569 = vpack.c.b16 %v1177, %v1169
  %v1570 = vpack.c.b16 %v1178, %v1170
  %v1571 = vpack.c.b16 %v1179, %v1171
  %v1572 = vpack.c.b16 %v1180, %v1172
  %v1573 = vpack.c.b16 %v1189, %v1181
  %v1574 = vpack.c.b16 %v1190, %v1182
  %v1575 = vpack.c.b16 %v1191, %v1183
  %v1576 = vpack.c.b16 %v1192, %v1184
  %v1577 = vpack.c.b16 %v1193, %v1185
  %v1578 = vpack.c.b16 %v1194, %v1186
  %v1579 = vpack.c.b16 %v1195, %v1187
  %v1580 = vpack.c.b16 %v1196, %v1188
  %v1581 = vpack.c.b16 %v1205, %v1197
  %v1582 = vpack.c.b16 %v1206, %v1198
  %v1583 = vpack.c.b16 %v1207, %v1199
  %v1584 = vpack.c.b16 %v1208, %v1200
  %v1585 = vpack.c.b16 %v1209, %v1201
  %v1586 = vpack.c.b16 %v1210, %v1202
  %v1587 = vpack.c.b16 %v1211, %v1203
  %v1588 = vpack.c.b16 %v1212, %v1204
  %v1589 = vpack.c.b16 %v1221, %v1213
  %v1590 = vpack.c.b16 %v1222, %v1214
  %v1591 = vpack.c.b16 %v1223, %v1215
  %v1592 = vpack.c.b16 %v1224, %v1216
  %v1593 = vpack.c.b16 %v1225, %v1217
  %v1594 = vpack.c.b16 %v1226, %v1218
  %v1595 = vpack.c.b16 %v1227, %v1219
  %v1596 = vpack.c.b16 %v1228, %v1220
  %v1597 = vpack.c.b16 %v1237, %v1229
  %v1598 = vpack.c.b16 %v1238, %v1230
  %v1599 = vpack.c.b16 %v1239, %v1231
  %v1600 = vpack.c.b16 %v1240, %v1232
  %v1601 = vpack.c.b16 %v1241, %v1233
  %v1602 = vpack.c.b16 %v1242, %v1234
  %v1603 = vpack.c.b16 %v1243, %v1235
  %v1604 = vpack.c.b16 %v1244, %v1236
  %v1605 = vpack.c.b16 %v1253, %v1245
  %v1606 = vpack.c.b16 %v1254, %v1246
  %v1607 = vpack.c.b16 %v1255, %v1247
  %v1608 = vpack.c.b16 %v1256, %v1248
  %v1609 = vpack.c.b16 %v1257, %v1249
  %v1610 = vpack.c.b16 %v1258, %v1250
  %v1611 = vpack.c.b16 %v1259, %v1251
  %v1612 = vpack.c.b16 %v1260, %v1252
  %v1613 = vpack.c.b16 %v1269, %v1261
  %v1614 = vpack.c.b16 %v1270, %v1262
  %v1615 = vpack.c.b16 %v1271, %v1263
  %v1616 = vpack.c.b16 %v1272, %v1264
  %v1617 = vpack.c.b16 %v1273, %v1265
  %v1618 = vpack.c.b16 %v1274, %v1266
  %v1619 = vpack.c.b16 %v1275, %v1267
  %v1620 = vpack.c.b16 %v1276, %v1268
  %v1621 = vpack.c.b16 %v1285, %v1277
  %v1622 = vpack.c.b16 %v1286, %v1278
  %v1623 = vpack.c.b16 %v1287, %v1279
  %v1624 = vpack.c.b16 %v1288, %v1280
  %v1625 = vpack.c.b16 %v1289, %v1281
  %v1626 = vpack.c.b16 %v1290, %v1282
  %v1627 = vpack.c.b16 %v1291, %v1283
  %v1628 = vpack.c.b16 %v1292, %v1284
  %v1629 = vpack.c.b16 %v1301, %v1293
  %v1630 = vpack.c.b16 %v1302, %v1294
  %v1631 = vpack.c.b16 %v1303, %v1295
  %v1632 = vpack.c.b16 %v1304, %v1296
  %v1633 = vpack.c.b16 %v1305, %v1297
  %v1634 = vpack.c.b16 %v1306, %v1298
  %v1635 = vpack.c.b16 %v1307, %v1299
  %v1636 = vpack.c.b16 %v1308, %v1300
  %v1637 = vpack.c.b16 %v1317, %v1309
  %v1638 = vpack.c.b16 %v1318, %v1310
  %v1639 = vpack.c.b16 %v1319, %v1311
  %v1640 = vpack.c.b16 %v1320, %v1312
  %v1641 = vpack.c.b16 %v1321, %v1313
  %v1642 = vpack.c.b16 %v1322, %v1314
  %v1643 = vpack.c.b16 %v1323, %v1315
  %v1644 = vpack.c.b16 %v1324, %v1316
  %v1645 = vpack.c.b16 %v1333, %v1325
  %v1646 = vpack.c.b16 %v1334, %v1326
  %v1647 = vpack.c.b16 %v1335, %v1327
  %v1648 = vpack.c.b16 %v1336, %v1328
  %v1649 = vpack.c.b16 %v1337, %v1329
  %v1650 = vpack.c.b16 %v1338, %v1330
  %v1651 = vpack.c.b16 %v1339, %v1331
  %v1652 = vpack.c.b16 %v1340, %v1332
  %v1653 = vpack.c.b16 %v1349, %v1341
  %v1654 = vpack.c.b16 %v1350, %v1342
  %v1655 = vpack.c.b16 %v1351, %v1343
  %v1656 = vpack.c.b16 %v1352, %v1344
  %v1657 = vpack.c.b16 %v1353, %v1345
  %v1658 = vpack.c.b16 %v1354, %v1346
  %v1659 = vpack.c.b16 %v1355, %v1347
  %v1660 = vpack.c.b16 %v1356, %v1348
  %v1661 = vpack.c.b16 %v1365, %v1357
  %v1662 = vpack.c.b16 %v1366, %v1358
  %v1663 = vpack.c.b16 %v1367, %v1359
  %v1664 = vpack.c.b16 %v1368, %v1360
  %v1665 = vpack.c.b16 %v1369, %v1361
  %v1666 = vpack.c.b16 %v1370, %v1362
  %v1667 = vpack.c.b16 %v1371, %v1363
  %v1668 = vpack.c.b16 %v1372, %v1364
  %v1669 = vpack.c.b16 %v1381, %v1373
  %v1670 = vpack.c.b16 %v1382, %v1374
  %v1671 = vpack.c.b16 %v1383, %v1375
  %v1672 = vpack.c.b16 %v1384, %v1376
  %v1673 = vpack.c.b16 %v1385, %v1377
  %v1674 = vpack.c.b16 %v1386, %v1378
  %v1675 = vpack.c.b16 %v1387, %v1379
  %v1676 = vpack.c.b16 %v1388, %v1380
  %v1677 = vpack.c.b16 %v1397, %v1389
  %v1678 = vpack.c.b16 %v1398, %v1390
  %v1679 = vpack.c.b16 %v1399, %v1391
  %v1680 = vpack.c.b16 %v1400, %v1392
  %v1681 = vpack.c.b16 %v1401, %v1393
  %v1682 = vpack.c.b16 %v1402, %v1394
  %v1683 = vpack.c.b16 %v1403, %v1395
  %v1684 = vpack.c.b16 %v1404, %v1396
  %v1685 = vpack.c.b16 %v1413, %v1405
  %v1686 = vpack.c.b16 %v1414, %v1406
  %v1687 = vpack.c.b16 %v1415, %v1407
  %v1688 = vpack.c.b16 %v1416, %v1408
  %v1689 = vpack.c.b16 %v1417, %v1409
  %v1690 = vpack.c.b16 %v1418, %v1410
  %v1691 = vpack.c.b16 %v1419, %v1411
  %v1692 = vpack.c.b16 %v1420, %v1412
  %v1693 = vpack.c.b16 %v1429, %v1421
  %v1694 = vpack.c.b16 %v1430, %v1422
  %v1695 = vpack.c.b16 %v1431, %v1423
  %v1696 = vpack.c.b16 %v1432, %v1424
  %v1697 = vpack.c.b16 %v1433, %v1425
  %v1698 = vpack.c.b16 %v1434, %v1426
  %v1699 = vpack.c.b16 %v1435, %v1427
  %v1700 = vpack.c.b16 %v1436, %v1428
  %v1701 = vpack.c.b16 %v1445, %v1437
  %v1702 = vpack.c.b16 %v1446, %v1438
  %v1703 = vpack.c.b16 %v1447, %v1439
  %v1704 = vpack.c.b16 %v1448, %v1440
  %v1705 = vpack.c.b16 %v1449, %v1441
  %v1706 = vpack.c.b16 %v1450, %v1442
  %v1707 = vpack.c.b16 %v1451, %v1443
  %v1708 = vpack.c.b16 %v1452, %v1444
  %1965 = vmatprep.subr.bf16.mxu0 %v1454
  %1966 = vmatpush1.bf16.msra.mxu0 %v1453
  %1967 = vmatprep.subr.bf16.mxu0 %v1462
  %1968 = vmatpush1.bf16.msra.mxu0 %v1461
  %1969 = vmatprep.subr.bf16.mxu0 %v1470
  %1970 = vmatpush1.bf16.msra.mxu0 %v1469
  %1971 = vmatprep.subr.bf16.mxu0 %v1478
  %1972 = vmatpush1.bf16.msra.mxu0 %v1477
  %1973 = vmatprep.subr.bf16.mxu0 %v1486
  %1974 = vmatpush1.bf16.msra.mxu0 %v1485
  %1975 = vmatprep.subr.bf16.mxu0 %v1494
  %1976 = vmatpush1.bf16.msra.mxu0 %v1493
  %1977 = vmatprep.subr.bf16.mxu0 %v1502
  %1978 = vmatpush1.bf16.msra.mxu0 %v1501
  %1979 = vmatprep.subr.bf16.mxu0 %v1510
  %1980 = vmatpush1.bf16.msra.mxu0 %v1509
  %1981 = vmatprep.subr.bf16.mxu0 %v1518
  %1982 = vmatpush1.bf16.msra.mxu0 %v1517
  %1983 = vmatprep.subr.bf16.mxu0 %v1526
  %1984 = vmatpush1.bf16.msra.mxu0 %v1525
  %1985 = vmatprep.subr.bf16.mxu0 %v1534
  %1986 = vmatpush1.bf16.msra.mxu0 %v1533
  %1987 = vmatprep.subr.bf16.mxu0 %v1542
  %1988 = vmatpush1.bf16.msra.mxu0 %v1541
  %1989 = vmatprep.subr.bf16.mxu0 %v1550
  %1990 = vmatpush1.bf16.msra.mxu0 %v1549
  %1991 = vmatprep.subr.bf16.mxu0 %v1558
  %1992 = vmatpush1.bf16.msra.mxu0 %v1557
  %1993 = vmatprep.subr.bf16.mxu0 %v1566
  %1994 = vmatpush1.bf16.msra.mxu0 %v1565
  %1995 = vmatprep.subr.bf16.mxu0 %v1574
  %1996 = vmatpush1.bf16.msra.mxu0 %v1573
  %1997 = vmatprep.mubr.bf16.mxu0 %v384
  %1998 = vmatmul.mubr.bf16.gmra.mrb[0].mxu0 %v383
  %v1999 = vpop.f32.mrb[0].mxu0
  %v2000 = vadd.f32 %v648, %v1999
  %v2001 = vpop.f32.mrb[0].mxu0
  %v2002 = vadd.f32 %v652, %v2001
  %v2003 = vpop.f32.mrb[0].mxu0
  %v2004 = vpop.f32.mrb[0].mxu0
  %2005 = vdwg.mxu0
  %2006 = vmatprep.subr.bf16.mxu0 %v1582
  %2007 = vmatpush1.bf16.msra.mxu0 %v1581
  %2008 = vmatprep.subr.bf16.mxu0 %v1590
  %2009 = vmatpush1.bf16.msra.mxu0 %v1589
  %2010 = vmatprep.subr.bf16.mxu0 %v1598
  %2011 = vmatpush1.bf16.msra.mxu0 %v1597
  %2012 = vmatprep.subr.bf16.mxu0 %v1606
  %2013 = vmatpush1.bf16.msra.mxu0 %v1605
  %2014 = vmatprep.subr.bf16.mxu0 %v1614
  %2015 = vmatpush1.bf16.msra.mxu0 %v1613
  %2016 = vmatprep.subr.bf16.mxu0 %v1622
  %2017 = vmatpush1.bf16.msra.mxu0 %v1621
  %2018 = vmatprep.subr.bf16.mxu0 %v1630
  %2019 = vmatpush1.bf16.msra.mxu0 %v1629
  %2020 = vmatprep.subr.bf16.mxu0 %v1638
  %2021 = vmatpush1.bf16.msra.mxu0 %v1637
  %2022 = vmatprep.subr.bf16.mxu0 %v1646
  %2023 = vmatpush1.bf16.msra.mxu0 %v1645
  %2024 = vmatprep.subr.bf16.mxu0 %v1654
  %2025 = vmatpush1.bf16.msra.mxu0 %v1653
  %2026 = vmatprep.subr.bf16.mxu0 %v1662
  %2027 = vmatpush1.bf16.msra.mxu0 %v1661
  %2028 = vmatprep.subr.bf16.mxu0 %v1670
  %2029 = vmatpush1.bf16.msra.mxu0 %v1669
  %2030 = vmatprep.subr.bf16.mxu0 %v1678
  %2031 = vmatpush1.bf16.msra.mxu0 %v1677
  %2032 = vmatprep.subr.bf16.mxu0 %v1686
  %2033 = vmatpush1.bf16.msra.mxu0 %v1685
  %2034 = vmatprep.subr.bf16.mxu0 %v1694
  %2035 = vmatpush1.bf16.msra.mxu0 %v1693
  %2036 = vmatprep.subr.bf16.mxu0 %v1702
  %2037 = vmatpush1.bf16.msra.mxu0 %v1701
  %2038 = vmatprep.mubr.bf16.mxu0 %v386
  %2039 = vmatmul.mubr.bf16.gmra.mrb[0].mxu0 %v385
  %v2040 = vpop.f32.mrb[0].mxu0
  %v2041 = vadd.f32 %v2000, %v2040
  %v2042 = vpop.f32.mrb[0].mxu0
  %v2043 = vadd.f32 %v2002, %v2042
  %v2044 = vpop.f32.mrb[0].mxu0
  %v2045 = vpop.f32.mrb[0].mxu0
  %2046 = vdwg.mxu0
  %2047 = vmatprep.subr.bf16.mxu0 %v1456
  %2048 = vmatpush1.bf16.msra.mxu0 %v1455
  %2049 = vmatprep.subr.bf16.mxu0 %v1464
  %2050 = vmatpush1.bf16.msra.mxu0 %v1463
  %2051 = vmatprep.subr.bf16.mxu0 %v1472
  %2052 = vmatpush1.bf16.msra.mxu0 %v1471
  %2053 = vmatprep.subr.bf16.mxu0 %v1480
  %2054 = vmatpush1.bf16.msra.mxu0 %v1479
  %2055 = vmatprep.subr.bf16.mxu0 %v1488
  %2056 = vmatpush1.bf16.msra.mxu0 %v1487
  %2057 = vmatprep.subr.bf16.mxu0 %v1496
  %2058 = vmatpush1.bf16.msra.mxu0 %v1495
  %2059 = vmatprep.subr.bf16.mxu0 %v1504
  %2060 = vmatpush1.bf16.msra.mxu0 %v1503
  %2061 = vmatprep.subr.bf16.mxu0 %v1512
  %2062 = vmatpush1.bf16.msra.mxu0 %v1511
  %2063 = vmatprep.subr.bf16.mxu0 %v1520
  %2064 = vmatpush1.bf16.msra.mxu0 %v1519
  %2065 = vmatprep.subr.bf16.mxu0 %v1528
  %2066 = vmatpush1.bf16.msra.mxu0 %v1527
  %2067 = vmatprep.subr.bf16.mxu0 %v1536
  %2068 = vmatpush1.bf16.msra.mxu0 %v1535
  %2069 = vmatprep.subr.bf16.mxu0 %v1544
  %2070 = vmatpush1.bf16.msra.mxu0 %v1543
  %2071 = vmatprep.subr.bf16.mxu0 %v1552
  %2072 = vmatpush1.bf16.msra.mxu0 %v1551
  %2073 = vmatprep.subr.bf16.mxu0 %v1560
  %2074 = vmatpush1.bf16.msra.mxu0 %v1559
  %2075 = vmatprep.subr.bf16.mxu0 %v1568
  %2076 = vmatpush1.bf16.msra.mxu0 %v1567
  %2077 = vmatprep.subr.bf16.mxu0 %v1576
  %2078 = vmatpush1.bf16.msra.mxu0 %v1575
  %2079 = vmatprep.mubr.bf16.mxu0 %v384
  %2080 = vmatmul.mubr.bf16.gmra.mrb[0].mxu0 %v383
  %v2081 = vpop.f32.mrb[0].mxu0
  %v2082 = vadd.f32 %v656, %v2081
  %v2083 = vpop.f32.mrb[0].mxu0
  %v2084 = vadd.f32 %v660, %v2083
  %v2085 = vpop.f32.mrb[0].mxu0
  %v2086 = vpop.f32.mrb[0].mxu0
  %2087 = vdwg.mxu0
  %2088 = vmatprep.subr.bf16.mxu0 %v1584
  %2089 = vmatpush1.bf16.msra.mxu0 %v1583
  %2090 = vmatprep.subr.bf16.mxu0 %v1592
  %2091 = vmatpush1.bf16.msra.mxu0 %v1591
  %2092 = vmatprep.subr.bf16.mxu0 %v1600
  %2093 = vmatpush1.bf16.msra.mxu0 %v1599
  %2094 = vmatprep.subr.bf16.mxu0 %v1608
  %2095 = vmatpush1.bf16.msra.mxu0 %v1607
  %2096 = vmatprep.subr.bf16.mxu0 %v1616
  %2097 = vmatpush1.bf16.msra.mxu0 %v1615
  %2098 = vmatprep.subr.bf16.mxu0 %v1624
  %2099 = vmatpush1.bf16.msra.mxu0 %v1623
  %2100 = vmatprep.subr.bf16.mxu0 %v1632
  %2101 = vmatpush1.bf16.msra.mxu0 %v1631
  %2102 = vmatprep.subr.bf16.mxu0 %v1640
  %2103 = vmatpush1.bf16.msra.mxu0 %v1639
  %2104 = vmatprep.subr.bf16.mxu0 %v1648
  %2105 = vmatpush1.bf16.msra.mxu0 %v1647
  %2106 = vmatprep.subr.bf16.mxu0 %v1656
  %2107 = vmatpush1.bf16.msra.mxu0 %v1655
  %2108 = vmatprep.subr.bf16.mxu0 %v1664
  %2109 = vmatpush1.bf16.msra.mxu0 %v1663
  %2110 = vmatprep.subr.bf16.mxu0 %v1672
  %2111 = vmatpush1.bf16.msra.mxu0 %v1671
  %2112 = vmatprep.subr.bf16.mxu0 %v1680
  %2113 = vmatpush1.bf16.msra.mxu0 %v1679
  %2114 = vmatprep.subr.bf16.mxu0 %v1688
  %2115 = vmatpush1.bf16.msra.mxu0 %v1687
  %2116 = vmatprep.subr.bf16.mxu0 %v1696
  %2117 = vmatpush1.bf16.msra.mxu0 %v1695
  %2118 = vmatprep.subr.bf16.mxu0 %v1704
  %2119 = vmatpush1.bf16.msra.mxu0 %v1703
  %2120 = vmatprep.mubr.bf16.mxu0 %v386
  %2121 = vmatmul.mubr.bf16.gmra.mrb[0].mxu0 %v385
  %v2122 = vpop.f32.mrb[0].mxu0
  %v2123 = vadd.f32 %v2082, %v2122
  %v2124 = vpop.f32.mrb[0].mxu0
  %v2125 = vadd.f32 %v2084, %v2124
  %v2126 = vpop.f32.mrb[0].mxu0
  %v2127 = vpop.f32.mrb[0].mxu0
  %2128 = vdwg.mxu0
  %2129 = vmatprep.subr.bf16.mxu0 %v1458
  %2130 = vmatpush1.bf16.msra.mxu0 %v1457
  %2131 = vmatprep.subr.bf16.mxu0 %v1466
  %2132 = vmatpush1.bf16.msra.mxu0 %v1465
  %2133 = vmatprep.subr.bf16.mxu0 %v1474
  %2134 = vmatpush1.bf16.msra.mxu0 %v1473
  %2135 = vmatprep.subr.bf16.mxu0 %v1482
  %2136 = vmatpush1.bf16.msra.mxu0 %v1481
  %2137 = vmatprep.subr.bf16.mxu0 %v1490
  %2138 = vmatpush1.bf16.msra.mxu0 %v1489
  %2139 = vmatprep.subr.bf16.mxu0 %v1498
  %2140 = vmatpush1.bf16.msra.mxu0 %v1497
  %2141 = vmatprep.subr.bf16.mxu0 %v1506
  %2142 = vmatpush1.bf16.msra.mxu0 %v1505
  %2143 = vmatprep.subr.bf16.mxu0 %v1514
  %2144 = vmatpush1.bf16.msra.mxu0 %v1513
  %2145 = vmatprep.subr.bf16.mxu0 %v1522
  %2146 = vmatpush1.bf16.msra.mxu0 %v1521
  %2147 = vmatprep.subr.bf16.mxu0 %v1530
  %2148 = vmatpush1.bf16.msra.mxu0 %v1529
  %2149 = vmatprep.subr.bf16.mxu0 %v1538
  %2150 = vmatpush1.bf16.msra.mxu0 %v1537
  %2151 = vmatprep.subr.bf16.mxu0 %v1546
  %2152 = vmatpush1.bf16.msra.mxu0 %v1545
  %2153 = vmatprep.subr.bf16.mxu0 %v1554
  %2154 = vmatpush1.bf16.msra.mxu0 %v1553
  %2155 = vmatprep.subr.bf16.mxu0 %v1562
  %2156 = vmatpush1.bf16.msra.mxu0 %v1561
  %2157 = vmatprep.subr.bf16.mxu0 %v1570
  %2158 = vmatpush1.bf16.msra.mxu0 %v1569
  %2159 = vmatprep.subr.bf16.mxu0 %v1578
  %2160 = vmatpush1.bf16.msra.mxu0 %v1577
  %2161 = vmatprep.mubr.bf16.mxu0 %v384
  %2162 = vmatmul.mubr.bf16.gmra.mrb[0].mxu0 %v383
  %v2163 = vpop.f32.mrb[0].mxu0
  %v2164 = vadd.f32 %v664, %v2163
  %v2165 = vpop.f32.mrb[0].mxu0
  %v2166 = vadd.f32 %v668, %v2165
  %v2167 = vpop.f32.mrb[0].mxu0
  %v2168 = vpop.f32.mrb[0].mxu0
  %2169 = vdwg.mxu0
  %2170 = vmatprep.subr.bf16.mxu0 %v1586
  %2171 = vmatpush1.bf16.msra.mxu0 %v1585
  %2172 = vmatprep.subr.bf16.mxu0 %v1594
  %2173 = vmatpush1.bf16.msra.mxu0 %v1593
  %2174 = vmatprep.subr.bf16.mxu0 %v1602
  %2175 = vmatpush1.bf16.msra.mxu0 %v1601
  %2176 = vmatprep.subr.bf16.mxu0 %v1610
  %2177 = vmatpush1.bf16.msra.mxu0 %v1609
  %2178 = vmatprep.subr.bf16.mxu0 %v1618
  %2179 = vmatpush1.bf16.msra.mxu0 %v1617
  %2180 = vmatprep.subr.bf16.mxu0 %v1626
  %2181 = vmatpush1.bf16.msra.mxu0 %v1625
  %2182 = vmatprep.subr.bf16.mxu0 %v1634
  %2183 = vmatpush1.bf16.msra.mxu0 %v1633
  %2184 = vmatprep.subr.bf16.mxu0 %v1642
  %2185 = vmatpush1.bf16.msra.mxu0 %v1641
  %2186 = vmatprep.subr.bf16.mxu0 %v1650
  %2187 = vmatpush1.bf16.msra.mxu0 %v1649
  %2188 = vmatprep.subr.bf16.mxu0 %v1658
  %2189 = vmatpush1.bf16.msra.mxu0 %v1657
  %2190 = vmatprep.subr.bf16.mxu0 %v1666
  %2191 = vmatpush1.bf16.msra.mxu0 %v1665
  %2192 = vmatprep.subr.bf16.mxu0 %v1674
  %2193 = vmatpush1.bf16.msra.mxu0 %v1673
  %2194 = vmatprep.subr.bf16.mxu0 %v1682
  %2195 = vmatpush1.bf16.msra.mxu0 %v1681
  %2196 = vmatprep.subr.bf16.mxu0 %v1690
  %2197 = vmatpush1.bf16.msra.mxu0 %v1689
  %2198 = vmatprep.subr.bf16.mxu0 %v1698
  %2199 = vmatpush1.bf16.msra.mxu0 %v1697
  %2200 = vmatprep.subr.bf16.mxu0 %v1706
  %2201 = vmatpush1.bf16.msra.mxu0 %v1705
  %2202 = vmatprep.mubr.bf16.mxu0 %v386
  %2203 = vmatmul.mubr.bf16.gmra.mrb[0].mxu0 %v385
  %v2204 = vpop.f32.mrb[0].mxu0
  %v2205 = vadd.f32 %v2164, %v2204
  %v2206 = vpop.f32.mrb[0].mxu0
  %v2207 = vadd.f32 %v2166, %v2206
  %v2208 = vpop.f32.mrb[0].mxu0
  %v2209 = vpop.f32.mrb[0].mxu0
  %2210 = vdwg.mxu0
  %2211 = vmatprep.subr.bf16.mxu0 %v1460
  %2212 = vmatpush1.bf16.msra.mxu0 %v1459
  %2213 = vmatprep.subr.bf16.mxu0 %v1468
  %2214 = vmatpush1.bf16.msra.mxu0 %v1467
  %2215 = vmatprep.subr.bf16.mxu0 %v1476
  %2216 = vmatpush1.bf16.msra.mxu0 %v1475
  %2217 = vmatprep.subr.bf16.mxu0 %v1484
  %2218 = vmatpush1.bf16.msra.mxu0 %v1483
  %2219 = vmatprep.subr.bf16.mxu0 %v1492
  %2220 = vmatpush1.bf16.msra.mxu0 %v1491
  %2221 = vmatprep.subr.bf16.mxu0 %v1500
  %2222 = vmatpush1.bf16.msra.mxu0 %v1499
  %2223 = vmatprep.subr.bf16.mxu0 %v1508
  %2224 = vmatpush1.bf16.msra.mxu0 %v1507
  %2225 = vmatprep.subr.bf16.mxu0 %v1516
  %2226 = vmatpush1.bf16.msra.mxu0 %v1515
  %2227 = vmatprep.subr.bf16.mxu0 %v1524
  %2228 = vmatpush1.bf16.msra.mxu0 %v1523
  %2229 = vmatprep.subr.bf16.mxu0 %v1532
  %2230 = vmatpush1.bf16.msra.mxu0 %v1531
  %2231 = vmatprep.subr.bf16.mxu0 %v1540
  %2232 = vmatpush1.bf16.msra.mxu0 %v1539
  %2233 = vmatprep.subr.bf16.mxu0 %v1548
  %2234 = vmatpush1.bf16.msra.mxu0 %v1547
  %2235 = vmatprep.subr.bf16.mxu0 %v1556
  %2236 = vmatpush1.bf16.msra.mxu0 %v1555
  %2237 = vmatprep.subr.bf16.mxu0 %v1564
  %2238 = vmatpush1.bf16.msra.mxu0 %v1563
  %2239 = vmatprep.subr.bf16.mxu0 %v1572
  %2240 = vmatpush1.bf16.msra.mxu0 %v1571
  %2241 = vmatprep.subr.bf16.mxu0 %v1580
  %2242 = vmatpush1.bf16.msra.mxu0 %v1579
  %2243 = vmatprep.mubr.bf16.mxu0 %v384
  %2244 = vmatmul.mubr.bf16.gmra.mrb[0].mxu0 %v383
  %v2245 = vpop.f32.mrb[0].mxu0
  %v2246 = vadd.f32 %v672, %v2245
  %v2247 = vpop.f32.mrb[0].mxu0
  %v2248 = vadd.f32 %v676, %v2247
  %v2249 = vpop.f32.mrb[0].mxu0
  %v2250 = vpop.f32.mrb[0].mxu0
  %2251 = vdwg.mxu0
  %2252 = vmatprep.subr.bf16.mxu0 %v1588
  %2253 = vmatpush1.bf16.msra.mxu0 %v1587
  %2254 = vmatprep.subr.bf16.mxu0 %v1596
  %2255 = vmatpush1.bf16.msra.mxu0 %v1595
  %2256 = vmatprep.subr.bf16.mxu0 %v1604
  %2257 = vmatpush1.bf16.msra.mxu0 %v1603
  %2258 = vmatprep.subr.bf16.mxu0 %v1612
  %2259 = vmatpush1.bf16.msra.mxu0 %v1611
  %2260 = vmatprep.subr.bf16.mxu0 %v1620
  %2261 = vmatpush1.bf16.msra.mxu0 %v1619
  %2262 = vmatprep.subr.bf16.mxu0 %v1628
  %2263 = vmatpush1.bf16.msra.mxu0 %v1627
  %2264 = vmatprep.subr.bf16.mxu0 %v1636
  %2265 = vmatpush1.bf16.msra.mxu0 %v1635
  %2266 = vmatprep.subr.bf16.mxu0 %v1644
  %2267 = vmatpush1.bf16.msra.mxu0 %v1643
  %2268 = vmatprep.subr.bf16.mxu0 %v1652
  %2269 = vmatpush1.bf16.msra.mxu0 %v1651
  %2270 = vmatprep.subr.bf16.mxu0 %v1660
  %2271 = vmatpush1.bf16.msra.mxu0 %v1659
  %2272 = vmatprep.subr.bf16.mxu0 %v1668
  %2273 = vmatpush1.bf16.msra.mxu0 %v1667
  %2274 = vmatprep.subr.bf16.mxu0 %v1676
  %2275 = vmatpush1.bf16.msra.mxu0 %v1675
  %2276 = vmatprep.subr.bf16.mxu0 %v1684
  %2277 = vmatpush1.bf16.msra.mxu0 %v1683
  %2278 = vmatprep.subr.bf16.mxu0 %v1692
  %2279 = vmatpush1.bf16.msra.mxu0 %v1691
  %2280 = vmatprep.subr.bf16.mxu0 %v1700
  %2281 = vmatpush1.bf16.msra.mxu0 %v1699
  %2282 = vmatprep.subr.bf16.mxu0 %v1708
  %2283 = vmatpush1.bf16.msra.mxu0 %v1707
  %2284 = vmatprep.mubr.bf16.mxu0 %v386
  %2285 = vmatmul.mubr.bf16.gmra.mrb[0].mxu0 %v385
  %v2286 = vpop.f32.mrb[0].mxu0
  %v2287 = vadd.f32 %v2246, %v2286
  %v2288 = vpop.f32.mrb[0].mxu0
  %v2289 = vadd.f32 %v2248, %v2288
  %v2290 = vpop.f32.mrb[0].mxu0
  %v2291 = vpop.f32.mrb[0].mxu0
  %2292 = vdwg.mxu0
  %v2293 = vmax.f32 %v2041, 0.0
  %v2294 = vmax.f32 %v2043, 0.0
  %v2295 = vmax.f32 %v2123, 0.0
  %v2296 = vmax.f32 %v2125, 0.0
  %v2297 = vmax.f32 %v2205, 0.0
  %v2298 = vmax.f32 %v2207, 0.0
  %v2299 = vmax.f32 %v2287, 0.0
  %v2300 = vmax.f32 %v2289, 0.0
  %v2301 = vpack.c.bf16 %v2293, %v2293
  %v2302 = vpack.c.bf16 %v2294, %v2294
  %v2303 = vpack.c.bf16 %v2295, %v2295
  %v2304 = vpack.c.bf16 %v2296, %v2296
  %v2305 = vpack.c.bf16 %v2297, %v2297
  %v2306 = vpack.c.bf16 %v2298, %v2298
  %v2307 = vpack.c.bf16 %v2299, %v2299
  %v2308 = vpack.c.bf16 %v2300, %v2300
  %v2309 = vld [vmem:[%s4] sm:$0xff]
  %v2310 = vld [vmem:[%s4 + $0x8] sm:$0xff]
  %v2311 = vld [vmem:[%s4 + $0x10] sm:$0xff]
  %v2312 = vld [vmem:[%s4 + $0x18] sm:$0xff]
  %v2313 = vld [vmem:[%s4 + $0x20] sm:$0xff]
  %v2314 = vld [vmem:[%s4 + $0x28] sm:$0xff]
  %v2315 = vld [vmem:[%s4 + $0x30] sm:$0xff]
  %v2316 = vld [vmem:[%s4 + $0x38] sm:$0xff]
  %v2317 = vld [vmem:[%s4 + $0x40] sm:$0xff]
  %v2318 = vld [vmem:[%s4 + $0x48] sm:$0xff]
  %v2319 = vld [vmem:[%s4 + $0x50] sm:$0xff]
  %v2320 = vld [vmem:[%s4 + $0x58] sm:$0xff]
  %v2321 = vld [vmem:[%s4 + $0x60] sm:$0xff]
  %v2322 = vld [vmem:[%s4 + $0x68] sm:$0xff]
  %v2323 = vld [vmem:[%s4 + $0x70] sm:$0xff]
  %v2324 = vld [vmem:[%s4 + $0x78] sm:$0xff]
  %v2325 = vld [vmem:[%s4 + $0x80] sm:$0xff]
  %v2326 = vld [vmem:[%s4 + $0x88] sm:$0xff]
  %v2327 = vld [vmem:[%s4 + $0x90] sm:$0xff]
  %v2328 = vld [vmem:[%s4 + $0x98] sm:$0xff]
  %v2329 = vld [vmem:[%s4 + $0xa0] sm:$0xff]
  %v2330 = vld [vmem:[%s4 + $0xa8] sm:$0xff]
  %v2331 = vld [vmem:[%s4 + $0xb0] sm:$0xff]
  %v2332 = vld [vmem:[%s4 + $0xb8] sm:$0xff]
  %v2333 = vld [vmem:[%s4 + $0xc0] sm:$0xff]
  %v2334 = vld [vmem:[%s4 + $0xc8] sm:$0xff]
  %v2335 = vld [vmem:[%s4 + $0xd0] sm:$0xff]
  %v2336 = vld [vmem:[%s4 + $0xd8] sm:$0xff]
  %v2337 = vld [vmem:[%s4 + $0xe0] sm:$0xff]
  %v2338 = vld [vmem:[%s4 + $0xe8] sm:$0xff]
  %v2339 = vld [vmem:[%s4 + $0xf0] sm:$0xff]
  %v2340 = vld [vmem:[%s4 + $0xf8] sm:$0xff]
  %v2341 = vld [vmem:[%s4 + $0x100] sm:$0xff]
  %v2342 = vld [vmem:[%s4 + $0x108] sm:$0xff]
  %v2343 = vld [vmem:[%s4 + $0x110] sm:$0xff]
  %v2344 = vld [vmem:[%s4 + $0x118] sm:$0xff]
  %v2345 = vld [vmem:[%s4 + $0x120] sm:$0xff]
  %v2346 = vld [vmem:[%s4 + $0x128] sm:$0xff]
  %v2347 = vld [vmem:[%s4 + $0x130] sm:$0xff]
  %v2348 = vld [vmem:[%s4 + $0x138] sm:$0xff]
  %v2349 = vld [vmem:[%s4 + $0x140] sm:$0xff]
  %v2350 = vld [vmem:[%s4 + $0x148] sm:$0xff]
  %v2351 = vld [vmem:[%s4 + $0x150] sm:$0xff]
  %v2352 = vld [vmem:[%s4 + $0x158] sm:$0xff]
  %v2353 = vld [vmem:[%s4 + $0x160] sm:$0xff]
  %v2354 = vld [vmem:[%s4 + $0x168] sm:$0xff]
  %v2355 = vld [vmem:[%s4 + $0x170] sm:$0xff]
  %v2356 = vld [vmem:[%s4 + $0x178] sm:$0xff]
  %v2357 = vld [vmem:[%s4 + $0x180] sm:$0xff]
  %v2358 = vld [vmem:[%s4 + $0x188] sm:$0xff]
  %v2359 = vld [vmem:[%s4 + $0x190] sm:$0xff]
  %v2360 = vld [vmem:[%s4 + $0x198] sm:$0xff]
  %v2361 = vld [vmem:[%s4 + $0x1a0] sm:$0xff]
  %v2362 = vld [vmem:[%s4 + $0x1a8] sm:$0xff]
  %v2363 = vld [vmem:[%s4 + $0x1b0] sm:$0xff]
  %v2364 = vld [vmem:[%s4 + $0x1b8] sm:$0xff]
  %v2365 = vld [vmem:[%s4 + $0x1c0] sm:$0xff]
  %v2366 = vld [vmem:[%s4 + $0x1c8] sm:$0xff]
  %v2367 = vld [vmem:[%s4 + $0x1d0] sm:$0xff]
  %v2368 = vld [vmem:[%s4 + $0x1d8] sm:$0xff]
  %v2369 = vld [vmem:[%s4 + $0x1e0] sm:$0xff]
  %v2370 = vld [vmem:[%s4 + $0x1e8] sm:$0xff]
  %v2371 = vld [vmem:[%s4 + $0x1f0] sm:$0xff]
  %v2372 = vld [vmem:[%s4 + $0x1f8] sm:$0xff]
  %v2373 = vld [vmem:[%s4 + $0x200] sm:$0xff]
  %v2374 = vld [vmem:[%s4 + $0x208] sm:$0xff]
  %v2375 = vld [vmem:[%s4 + $0x210] sm:$0xff]
  %v2376 = vld [vmem:[%s4 + $0x218] sm:$0xff]
  %v2377 = vld [vmem:[%s4 + $0x220] sm:$0xff]
  %v2378 = vld [vmem:[%s4 + $0x228] sm:$0xff]
  %v2379 = vld [vmem:[%s4 + $0x230] sm:$0xff]
  %v2380 = vld [vmem:[%s4 + $0x238] sm:$0xff]
  %v2381 = vld [vmem:[%s4 + $0x240] sm:$0xff]
  %v2382 = vld [vmem:[%s4 + $0x248] sm:$0xff]
  %v2383 = vld [vmem:[%s4 + $0x250] sm:$0xff]
  %v2384 = vld [vmem:[%s4 + $0x258] sm:$0xff]
  %v2385 = vld [vmem:[%s4 + $0x260] sm:$0xff]
  %v2386 = vld [vmem:[%s4 + $0x268] sm:$0xff]
  %v2387 = vld [vmem:[%s4 + $0x270] sm:$0xff]
  %v2388 = vld [vmem:[%s4 + $0x278] sm:$0xff]
  %v2389 = vld [vmem:[%s4 + $0x280] sm:$0xff]
  %v2390 = vld [vmem:[%s4 + $0x288] sm:$0xff]
  %v2391 = vld [vmem:[%s4 + $0x290] sm:$0xff]
  %v2392 = vld [vmem:[%s4 + $0x298] sm:$0xff]
  %v2393 = vld [vmem:[%s4 + $0x2a0] sm:$0xff]
  %v2394 = vld [vmem:[%s4 + $0x2a8] sm:$0xff]
  %v2395 = vld [vmem:[%s4 + $0x2b0] sm:$0xff]
  %v2396 = vld [vmem:[%s4 + $0x2b8] sm:$0xff]
  %v2397 = vld [vmem:[%s4 + $0x2c0] sm:$0xff]
  %v2398 = vld [vmem:[%s4 + $0x2c8] sm:$0xff]
  %v2399 = vld [vmem:[%s4 + $0x2d0] sm:$0xff]
  %v2400 = vld [vmem:[%s4 + $0x2d8] sm:$0xff]
  %v2401 = vld [vmem:[%s4 + $0x2e0] sm:$0xff]
  %v2402 = vld [vmem:[%s4 + $0x2e8] sm:$0xff]
  %v2403 = vld [vmem:[%s4 + $0x2f0] sm:$0xff]
  %v2404 = vld [vmem:[%s4 + $0x2f8] sm:$0xff]
  %v2405 = vld [vmem:[%s4 + $0x300] sm:$0xff]
  %v2406 = vld [vmem:[%s4 + $0x308] sm:$0xff]
  %v2407 = vld [vmem:[%s4 + $0x310] sm:$0xff]
  %v2408 = vld [vmem:[%s4 + $0x318] sm:$0xff]
  %v2409 = vld [vmem:[%s4 + $0x320] sm:$0xff]
  %v2410 = vld [vmem:[%s4 + $0x328] sm:$0xff]
  %v2411 = vld [vmem:[%s4 + $0x330] sm:$0xff]
  %v2412 = vld [vmem:[%s4 + $0x338] sm:$0xff]
  %v2413 = vld [vmem:[%s4 + $0x340] sm:$0xff]
  %v2414 = vld [vmem:[%s4 + $0x348] sm:$0xff]
  %v2415 = vld [vmem:[%s4 + $0x350] sm:$0xff]
  %v2416 = vld [vmem:[%s4 + $0x358] sm:$0xff]
  %v2417 = vld [vmem:[%s4 + $0x360] sm:$0xff]
  %v2418 = vld [vmem:[%s4 + $0x368] sm:$0xff]
  %v2419 = vld [vmem:[%s4 + $0x370] sm:$0xff]
  %v2420 = vld [vmem:[%s4 + $0x378] sm:$0xff]
  %v2421 = vld [vmem:[%s4 + $0x380] sm:$0xff]
  %v2422 = vld [vmem:[%s4 + $0x388] sm:$0xff]
  %v2423 = vld [vmem:[%s4 + $0x390] sm:$0xff]
  %v2424 = vld [vmem:[%s4 + $0x398] sm:$0xff]
  %v2425 = vld [vmem:[%s4 + $0x3a0] sm:$0xff]
  %v2426 = vld [vmem:[%s4 + $0x3a8] sm:$0xff]
  %v2427 = vld [vmem:[%s4 + $0x3b0] sm:$0xff]
  %v2428 = vld [vmem:[%s4 + $0x3b8] sm:$0xff]
  %v2429 = vld [vmem:[%s4 + $0x3c0] sm:$0xff]
  %v2430 = vld [vmem:[%s4 + $0x3c8] sm:$0xff]
  %v2431 = vld [vmem:[%s4 + $0x3d0] sm:$0xff]
  %v2432 = vld [vmem:[%s4 + $0x3d8] sm:$0xff]
  %v2433 = vld [vmem:[%s4 + $0x3e0] sm:$0xff]
  %v2434 = vld [vmem:[%s4 + $0x3e8] sm:$0xff]
  %v2435 = vld [vmem:[%s4 + $0x3f0] sm:$0xff]
  %v2436 = vld [vmem:[%s4 + $0x3f8] sm:$0xff]
  %v2437 = vld [vmem:[%s5] sm:$0x3]
  %v2439 = vlaneseq
  %v2440 = vshrl.u32 %v2439, 7
  %v2441 = vsub.s32 0, %v2440
  %v2442 = vrot.slane %v2437, %v2441
  %v2443 = vlaneseq
  %v2444 = vshrl.u32 %v2443, 7
  %v2445 = vsub.s32 1, %v2444
  %v2446 = vrot.slane %v2437, %v2445
  %v2577 = vunpack.c.l.b16 %v2309
  %v2578 = vunpack.c.h.b16 %v2309
  %v2579 = vunpack.c.l.b16 %v2310
  %v2580 = vunpack.c.h.b16 %v2310
  %v2581 = vunpack.c.l.b16 %v2311
  %v2582 = vunpack.c.h.b16 %v2311
  %v2583 = vunpack.c.l.b16 %v2312
  %v2584 = vunpack.c.h.b16 %v2312
  %v2585 = vunpack.c.l.b16 %v2313
  %v2586 = vunpack.c.h.b16 %v2313
  %v2587 = vunpack.c.l.b16 %v2314
  %v2588 = vunpack.c.h.b16 %v2314
  %v2589 = vunpack.c.l.b16 %v2315
  %v2590 = vunpack.c.h.b16 %v2315
  %v2591 = vunpack.c.l.b16 %v2316
  %v2592 = vunpack.c.h.b16 %v2316
  %v2593 = vunpack.c.l.b16 %v2317
  %v2594 = vunpack.c.h.b16 %v2317
  %v2595 = vunpack.c.l.b16 %v2318
  %v2596 = vunpack.c.h.b16 %v2318
  %v2597 = vunpack.c.l.b16 %v2319
  %v2598 = vunpack.c.h.b16 %v2319
  %v2599 = vunpack.c.l.b16 %v2320
  %v2600 = vunpack.c.h.b16 %v2320
  %v2601 = vunpack.c.l.b16 %v2321
  %v2602 = vunpack.c.h.b16 %v2321
  %v2603 = vunpack.c.l.b16 %v2322
  %v2604 = vunpack.c.h.b16 %v2322
  %v2605 = vunpack.c.l.b16 %v2323
  %v2606 = vunpack.c.h.b16 %v2323
  %v2607 = vunpack.c.l.b16 %v2324
  %v2608 = vunpack.c.h.b16 %v2324
  %v2609 = vunpack.c.l.b16 %v2325
  %v2610 = vunpack.c.h.b16 %v2325
  %v2611 = vunpack.c.l.b16 %v2326
  %v2612 = vunpack.c.h.b16 %v2326
  %v2613 = vunpack.c.l.b16 %v2327
  %v2614 = vunpack.c.h.b16 %v2327
  %v2615 = vunpack.c.l.b16 %v2328
  %v2616 = vunpack.c.h.b16 %v2328
  %v2617 = vunpack.c.l.b16 %v2329
  %v2618 = vunpack.c.h.b16 %v2329
  %v2619 = vunpack.c.l.b16 %v2330
  %v2620 = vunpack.c.h.b16 %v2330
  %v2621 = vunpack.c.l.b16 %v2331
  %v2622 = vunpack.c.h.b16 %v2331
  %v2623 = vunpack.c.l.b16 %v2332
  %v2624 = vunpack.c.h.b16 %v2332
  %v2625 = vunpack.c.l.b16 %v2333
  %v2626 = vunpack.c.h.b16 %v2333
  %v2627 = vunpack.c.l.b16 %v2334
  %v2628 = vunpack.c.h.b16 %v2334
  %v2629 = vunpack.c.l.b16 %v2335
  %v2630 = vunpack.c.h.b16 %v2335
  %v2631 = vunpack.c.l.b16 %v2336
  %v2632 = vunpack.c.h.b16 %v2336
  %v2633 = vunpack.c.l.b16 %v2337
  %v2634 = vunpack.c.h.b16 %v2337
  %v2635 = vunpack.c.l.b16 %v2338
  %v2636 = vunpack.c.h.b16 %v2338
  %v2637 = vunpack.c.l.b16 %v2339
  %v2638 = vunpack.c.h.b16 %v2339
  %v2639 = vunpack.c.l.b16 %v2340
  %v2640 = vunpack.c.h.b16 %v2340
  %v2641 = vunpack.c.l.b16 %v2341
  %v2642 = vunpack.c.h.b16 %v2341
  %v2643 = vunpack.c.l.b16 %v2342
  %v2644 = vunpack.c.h.b16 %v2342
  %v2645 = vunpack.c.l.b16 %v2343
  %v2646 = vunpack.c.h.b16 %v2343
  %v2647 = vunpack.c.l.b16 %v2344
  %v2648 = vunpack.c.h.b16 %v2344
  %v2649 = vunpack.c.l.b16 %v2345
  %v2650 = vunpack.c.h.b16 %v2345
  %v2651 = vunpack.c.l.b16 %v2346
  %v2652 = vunpack.c.h.b16 %v2346
  %v2653 = vunpack.c.l.b16 %v2347
  %v2654 = vunpack.c.h.b16 %v2347
  %v2655 = vunpack.c.l.b16 %v2348
  %v2656 = vunpack.c.h.b16 %v2348
  %v2657 = vunpack.c.l.b16 %v2349
  %v2658 = vunpack.c.h.b16 %v2349
  %v2659 = vunpack.c.l.b16 %v2350
  %v2660 = vunpack.c.h.b16 %v2350
  %v2661 = vunpack.c.l.b16 %v2351
  %v2662 = vunpack.c.h.b16 %v2351
  %v2663 = vunpack.c.l.b16 %v2352
  %v2664 = vunpack.c.h.b16 %v2352
  %v2665 = vunpack.c.l.b16 %v2353
  %v2666 = vunpack.c.h.b16 %v2353
  %v2667 = vunpack.c.l.b16 %v2354
  %v2668 = vunpack.c.h.b16 %v2354
  %v2669 = vunpack.c.l.b16 %v2355
  %v2670 = vunpack.c.h.b16 %v2355
  %v2671 = vunpack.c.l.b16 %v2356
  %v2672 = vunpack.c.h.b16 %v2356
  %v2673 = vunpack.c.l.b16 %v2357
  %v2674 = vunpack.c.h.b16 %v2357
  %v2675 = vunpack.c.l.b16 %v2358
  %v2676 = vunpack.c.h.b16 %v2358
  %v2677 = vunpack.c.l.b16 %v2359
  %v2678 = vunpack.c.h.b16 %v2359
  %v2679 = vunpack.c.l.b16 %v2360
  %v2680 = vunpack.c.h.b16 %v2360
  %v2681 = vunpack.c.l.b16 %v2361
  %v2682 = vunpack.c.h.b16 %v2361
  %v2683 = vunpack.c.l.b16 %v2362
  %v2684 = vunpack.c.h.b16 %v2362
  %v2685 = vunpack.c.l.b16 %v2363
  %v2686 = vunpack.c.h.b16 %v2363
  %v2687 = vunpack.c.l.b16 %v2364
  %v2688 = vunpack.c.h.b16 %v2364
  %v2689 = vunpack.c.l.b16 %v2365
  %v2690 = vunpack.c.h.b16 %v2365
  %v2691 = vunpack.c.l.b16 %v2366
  %v2692 = vunpack.c.h.b16 %v2366
  %v2693 = vunpack.c.l.b16 %v2367
  %v2694 = vunpack.c.h.b16 %v2367
  %v2695 = vunpack.c.l.b16 %v2368
  %v2696 = vunpack.c.h.b16 %v2368
  %v2697 = vunpack.c.l.b16 %v2369
  %v2698 = vunpack.c.h.b16 %v2369
  %v2699 = vunpack.c.l.b16 %v2370
  %v2700 = vunpack.c.h.b16 %v2370
  %v2701 = vunpack.c.l.b16 %v2371
  %v2702 = vunpack.c.h.b16 %v2371
  %v2703 = vunpack.c.l.b16 %v2372
  %v2704 = vunpack.c.h.b16 %v2372
  %v2705 = vunpack.c.l.b16 %v2373
  %v2706 = vunpack.c.h.b16 %v2373
  %v2707 = vunpack.c.l.b16 %v2374
  %v2708 = vunpack.c.h.b16 %v2374
  %v2709 = vunpack.c.l.b16 %v2375
  %v2710 = vunpack.c.h.b16 %v2375
  %v2711 = vunpack.c.l.b16 %v2376
  %v2712 = vunpack.c.h.b16 %v2376
  %v2713 = vunpack.c.l.b16 %v2377
  %v2714 = vunpack.c.h.b16 %v2377
  %v2715 = vunpack.c.l.b16 %v2378
  %v2716 = vunpack.c.h.b16 %v2378
  %v2717 = vunpack.c.l.b16 %v2379
  %v2718 = vunpack.c.h.b16 %v2379
  %v2719 = vunpack.c.l.b16 %v2380
  %v2720 = vunpack.c.h.b16 %v2380
  %v2721 = vunpack.c.l.b16 %v2381
  %v2722 = vunpack.c.h.b16 %v2381
  %v2723 = vunpack.c.l.b16 %v2382
  %v2724 = vunpack.c.h.b16 %v2382
  %v2725 = vunpack.c.l.b16 %v2383
  %v2726 = vunpack.c.h.b16 %v2383
  %v2727 = vunpack.c.l.b16 %v2384
  %v2728 = vunpack.c.h.b16 %v2384
  %v2729 = vunpack.c.l.b16 %v2385
  %v2730 = vunpack.c.h.b16 %v2385
  %v2731 = vunpack.c.l.b16 %v2386
  %v2732 = vunpack.c.h.b16 %v2386
  %v2733 = vunpack.c.l.b16 %v2387
  %v2734 = vunpack.c.h.b16 %v2387
  %v2735 = vunpack.c.l.b16 %v2388
  %v2736 = vunpack.c.h.b16 %v2388
  %v2737 = vunpack.c.l.b16 %v2389
  %v2738 = vunpack.c.h.b16 %v2389
  %v2739 = vunpack.c.l.b16 %v2390
  %v2740 = vunpack.c.h.b16 %v2390
  %v2741 = vunpack.c.l.b16 %v2391
  %v2742 = vunpack.c.h.b16 %v2391
  %v2743 = vunpack.c.l.b16 %v2392
  %v2744 = vunpack.c.h.b16 %v2392
  %v2745 = vunpack.c.l.b16 %v2393
  %v2746 = vunpack.c.h.b16 %v2393
  %v2747 = vunpack.c.l.b16 %v2394
  %v2748 = vunpack.c.h.b16 %v2394
  %v2749 = vunpack.c.l.b16 %v2395
  %v2750 = vunpack.c.h.b16 %v2395
  %v2751 = vunpack.c.l.b16 %v2396
  %v2752 = vunpack.c.h.b16 %v2396
  %v2753 = vunpack.c.l.b16 %v2397
  %v2754 = vunpack.c.h.b16 %v2397
  %v2755 = vunpack.c.l.b16 %v2398
  %v2756 = vunpack.c.h.b16 %v2398
  %v2757 = vunpack.c.l.b16 %v2399
  %v2758 = vunpack.c.h.b16 %v2399
  %v2759 = vunpack.c.l.b16 %v2400
  %v2760 = vunpack.c.h.b16 %v2400
  %v2761 = vunpack.c.l.b16 %v2401
  %v2762 = vunpack.c.h.b16 %v2401
  %v2763 = vunpack.c.l.b16 %v2402
  %v2764 = vunpack.c.h.b16 %v2402
  %v2765 = vunpack.c.l.b16 %v2403
  %v2766 = vunpack.c.h.b16 %v2403
  %v2767 = vunpack.c.l.b16 %v2404
  %v2768 = vunpack.c.h.b16 %v2404
  %v2769 = vunpack.c.l.b16 %v2405
  %v2770 = vunpack.c.h.b16 %v2405
  %v2771 = vunpack.c.l.b16 %v2406
  %v2772 = vunpack.c.h.b16 %v2406
  %v2773 = vunpack.c.l.b16 %v2407
  %v2774 = vunpack.c.h.b16 %v2407
  %v2775 = vunpack.c.l.b16 %v2408
  %v2776 = vunpack.c.h.b16 %v2408
  %v2777 = vunpack.c.l.b16 %v2409
  %v2778 = vunpack.c.h.b16 %v2409
  %v2779 = vunpack.c.l.b16 %v2410
  %v2780 = vunpack.c.h.b16 %v2410
  %v2781 = vunpack.c.l.b16 %v2411
  %v2782 = vunpack.c.h.b16 %v2411
  %v2783 = vunpack.c.l.b16 %v2412
  %v2784 = vunpack.c.h.b16 %v2412
  %v2785 = vunpack.c.l.b16 %v2413
  %v2786 = vunpack.c.h.b16 %v2413
  %v2787 = vunpack.c.l.b16 %v2414
  %v2788 = vunpack.c.h.b16 %v2414
  %v2789 = vunpack.c.l.b16 %v2415
  %v2790 = vunpack.c.h.b16 %v2415
  %v2791 = vunpack.c.l.b16 %v2416
  %v2792 = vunpack.c.h.b16 %v2416
  %v2793 = vunpack.c.l.b16 %v2417
  %v2794 = vunpack.c.h.b16 %v2417
  %v2795 = vunpack.c.l.b16 %v2418
  %v2796 = vunpack.c.h.b16 %v2418
  %v2797 = vunpack.c.l.b16 %v2419
  %v2798 = vunpack.c.h.b16 %v2419
  %v2799 = vunpack.c.l.b16 %v2420
  %v2800 = vunpack.c.h.b16 %v2420
  %v2801 = vunpack.c.l.b16 %v2421
  %v2802 = vunpack.c.h.b16 %v2421
  %v2803 = vunpack.c.l.b16 %v2422
  %v2804 = vunpack.c.h.b16 %v2422
  %v2805 = vunpack.c.l.b16 %v2423
  %v2806 = vunpack.c.h.b16 %v2423
  %v2807 = vunpack.c.l.b16 %v2424
  %v2808 = vunpack.c.h.b16 %v2424
  %v2809 = vunpack.c.l.b16 %v2425
  %v2810 = vunpack.c.h.b16 %v2425
  %v2811 = vunpack.c.l.b16 %v2426
  %v2812 = vunpack.c.h.b16 %v2426
  %v2813 = vunpack.c.l.b16 %v2427
  %v2814 = vunpack.c.h.b16 %v2427
  %v2815 = vunpack.c.l.b16 %v2428
  %v2816 = vunpack.c.h.b16 %v2428
  %v2817 = vunpack.c.l.b16 %v2429
  %v2818 = vunpack.c.h.b16 %v2429
  %v2819 = vunpack.c.l.b16 %v2430
  %v2820 = vunpack.c.h.b16 %v2430
  %v2821 = vunpack.c.l.b16 %v2431
  %v2822 = vunpack.c.h.b16 %v2431
  %v2823 = vunpack.c.l.b16 %v2432
  %v2824 = vunpack.c.h.b16 %v2432
  %v2825 = vunpack.c.l.b16 %v2433
  %v2826 = vunpack.c.h.b16 %v2433
  %v2827 = vunpack.c.l.b16 %v2434
  %v2828 = vunpack.c.h.b16 %v2434
  %v2829 = vunpack.c.l.b16 %v2435
  %v2830 = vunpack.c.h.b16 %v2435
  %v2831 = vunpack.c.l.b16 %v2436
  %v2832 = vunpack.c.h.b16 %v2436
  %v2833 = vpack.c.b16 %v2579, %v2577
  %v2834 = vpack.c.b16 %v2580, %v2578
  %v2835 = vpack.c.b16 %v2583, %v2581
  %v2836 = vpack.c.b16 %v2584, %v2582
  %v2837 = vpack.c.b16 %v2587, %v2585
  %v2838 = vpack.c.b16 %v2588, %v2586
  %v2839 = vpack.c.b16 %v2591, %v2589
  %v2840 = vpack.c.b16 %v2592, %v2590
  %v2841 = vpack.c.b16 %v2595, %v2593
  %v2842 = vpack.c.b16 %v2596, %v2594
  %v2843 = vpack.c.b16 %v2599, %v2597
  %v2844 = vpack.c.b16 %v2600, %v2598
  %v2845 = vpack.c.b16 %v2603, %v2601
  %v2846 = vpack.c.b16 %v2604, %v2602
  %v2847 = vpack.c.b16 %v2607, %v2605
  %v2848 = vpack.c.b16 %v2608, %v2606
  %v2849 = vpack.c.b16 %v2611, %v2609
  %v2850 = vpack.c.b16 %v2612, %v2610
  %v2851 = vpack.c.b16 %v2615, %v2613
  %v2852 = vpack.c.b16 %v2616, %v2614
  %v2853 = vpack.c.b16 %v2619, %v2617
  %v2854 = vpack.c.b16 %v2620, %v2618
  %v2855 = vpack.c.b16 %v2623, %v2621
  %v2856 = vpack.c.b16 %v2624, %v2622
  %v2857 = vpack.c.b16 %v2627, %v2625
  %v2858 = vpack.c.b16 %v2628, %v2626
  %v2859 = vpack.c.b16 %v2631, %v2629
  %v2860 = vpack.c.b16 %v2632, %v2630
  %v2861 = vpack.c.b16 %v2635, %v2633
  %v2862 = vpack.c.b16 %v2636, %v2634
  %v2863 = vpack.c.b16 %v2639, %v2637
  %v2864 = vpack.c.b16 %v2640, %v2638
  %v2865 = vpack.c.b16 %v2643, %v2641
  %v2866 = vpack.c.b16 %v2644, %v2642
  %v2867 = vpack.c.b16 %v2647, %v2645
  %v2868 = vpack.c.b16 %v2648, %v2646
  %v2869 = vpack.c.b16 %v2651, %v2649
  %v2870 = vpack.c.b16 %v2652, %v2650
  %v2871 = vpack.c.b16 %v2655, %v2653
  %v2872 = vpack.c.b16 %v2656, %v2654
  %v2873 = vpack.c.b16 %v2659, %v2657
  %v2874 = vpack.c.b16 %v2660, %v2658
  %v2875 = vpack.c.b16 %v2663, %v2661
  %v2876 = vpack.c.b16 %v2664, %v2662
  %v2877 = vpack.c.b16 %v2667, %v2665
  %v2878 = vpack.c.b16 %v2668, %v2666
  %v2879 = vpack.c.b16 %v2671, %v2669
  %v2880 = vpack.c.b16 %v2672, %v2670
  %v2881 = vpack.c.b16 %v2675, %v2673
  %v2882 = vpack.c.b16 %v2676, %v2674
  %v2883 = vpack.c.b16 %v2679, %v2677
  %v2884 = vpack.c.b16 %v2680, %v2678
  %v2885 = vpack.c.b16 %v2683, %v2681
  %v2886 = vpack.c.b16 %v2684, %v2682
  %v2887 = vpack.c.b16 %v2687, %v2685
  %v2888 = vpack.c.b16 %v2688, %v2686
  %v2889 = vpack.c.b16 %v2691, %v2689
  %v2890 = vpack.c.b16 %v2692, %v2690
  %v2891 = vpack.c.b16 %v2695, %v2693
  %v2892 = vpack.c.b16 %v2696, %v2694
  %v2893 = vpack.c.b16 %v2699, %v2697
  %v2894 = vpack.c.b16 %v2700, %v2698
  %v2895 = vpack.c.b16 %v2703, %v2701
  %v2896 = vpack.c.b16 %v2704, %v2702
  %v2897 = vpack.c.b16 %v2707, %v2705
  %v2898 = vpack.c.b16 %v2708, %v2706
  %v2899 = vpack.c.b16 %v2711, %v2709
  %v2900 = vpack.c.b16 %v2712, %v2710
  %v2901 = vpack.c.b16 %v2715, %v2713
  %v2902 = vpack.c.b16 %v2716, %v2714
  %v2903 = vpack.c.b16 %v2719, %v2717
  %v2904 = vpack.c.b16 %v2720, %v2718
  %v2905 = vpack.c.b16 %v2723, %v2721
  %v2906 = vpack.c.b16 %v2724, %v2722
  %v2907 = vpack.c.b16 %v2727, %v2725
  %v2908 = vpack.c.b16 %v2728, %v2726
  %v2909 = vpack.c.b16 %v2731, %v2729
  %v2910 = vpack.c.b16 %v2732, %v2730
  %v2911 = vpack.c.b16 %v2735, %v2733
  %v2912 = vpack.c.b16 %v2736, %v2734
  %v2913 = vpack.c.b16 %v2739, %v2737
  %v2914 = vpack.c.b16 %v2740, %v2738
  %v2915 = vpack.c.b16 %v2743, %v2741
  %v2916 = vpack.c.b16 %v2744, %v2742
  %v2917 = vpack.c.b16 %v2747, %v2745
  %v2918 = vpack.c.b16 %v2748, %v2746
  %v2919 = vpack.c.b16 %v2751, %v2749
  %v2920 = vpack.c.b16 %v2752, %v2750
  %v2921 = vpack.c.b16 %v2755, %v2753
  %v2922 = vpack.c.b16 %v2756, %v2754
  %v2923 = vpack.c.b16 %v2759, %v2757
  %v2924 = vpack.c.b16 %v2760, %v2758
  %v2925 = vpack.c.b16 %v2763, %v2761
  %v2926 = vpack.c.b16 %v2764, %v2762
  %v2927 = vpack.c.b16 %v2767, %v2765
  %v2928 = vpack.c.b16 %v2768, %v2766
  %v2929 = vpack.c.b16 %v2771, %v2769
  %v2930 = vpack.c.b16 %v2772, %v2770
  %v2931 = vpack.c.b16 %v2775, %v2773
  %v2932 = vpack.c.b16 %v2776, %v2774
  %v2933 = vpack.c.b16 %v2779, %v2777
  %v2934 = vpack.c.b16 %v2780, %v2778
  %v2935 = vpack.c.b16 %v2783, %v2781
  %v2936 = vpack.c.b16 %v2784, %v2782
  %v2937 = vpack.c.b16 %v2787, %v2785
  %v2938 = vpack.c.b16 %v2788, %v2786
  %v2939 = vpack.c.b16 %v2791, %v2789
  %v2940 = vpack.c.b16 %v2792, %v2790
  %v2941 = vpack.c.b16 %v2795, %v2793
  %v2942 = vpack.c.b16 %v2796, %v2794
  %v2943 = vpack.c.b16 %v2799, %v2797
  %v2944 = vpack.c.b16 %v2800, %v2798
  %v2945 = vpack.c.b16 %v2803, %v2801
  %v2946 = vpack.c.b16 %v2804, %v2802
  %v2947 = vpack.c.b16 %v2807, %v2805
  %v2948 = vpack.c.b16 %v2808, %v2806
  %v2949 = vpack.c.b16 %v2811, %v2809
  %v2950 = vpack.c.b16 %v2812, %v2810
  %v2951 = vpack.c.b16 %v2815, %v2813
  %v2952 = vpack.c.b16 %v2816, %v2814
  %v2953 = vpack.c.b16 %v2819, %v2817
  %v2954 = vpack.c.b16 %v2820, %v2818
  %v2955 = vpack.c.b16 %v2823, %v2821
  %v2956 = vpack.c.b16 %v2824, %v2822
  %v2957 = vpack.c.b16 %v2827, %v2825
  %v2958 = vpack.c.b16 %v2828, %v2826
  %v2959 = vpack.c.b16 %v2831, %v2829
  %v2960 = vpack.c.b16 %v2832, %v2830
  %3089 = vmatprep.subr.bf16.mxu0 %v2834
  %3090 = vmatpush1.bf16.msra.mxu0 %v2833
  %3091 = vmatprep.subr.bf16.mxu0 %v2836
  %3092 = vmatpush1.bf16.msra.mxu0 %v2835
  %3093 = vmatprep.subr.bf16.mxu0 %v2838
  %3094 = vmatpush1.bf16.msra.mxu0 %v2837
  %3095 = vmatprep.subr.bf16.mxu0 %v2840
  %3096 = vmatpush1.bf16.msra.mxu0 %v2839
  %3097 = vmatprep.subr.bf16.mxu0 %v2842
  %3098 = vmatpush1.bf16.msra.mxu0 %v2841
  %3099 = vmatprep.subr.bf16.mxu0 %v2844
  %3100 = vmatpush1.bf16.msra.mxu0 %v2843
  %3101 = vmatprep.subr.bf16.mxu0 %v2846
  %3102 = vmatpush1.bf16.msra.mxu0 %v2845
  %3103 = vmatprep.subr.bf16.mxu0 %v2848
  %3104 = vmatpush1.bf16.msra.mxu0 %v2847
  %3105 = vmatprep.subr.bf16.mxu0 %v2850
  %3106 = vmatpush1.bf16.msra.mxu0 %v2849
  %3107 = vmatprep.subr.bf16.mxu0 %v2852
  %3108 = vmatpush1.bf16.msra.mxu0 %v2851
  %3109 = vmatprep.subr.bf16.mxu0 %v2854
  %3110 = vmatpush1.bf16.msra.mxu0 %v2853
  %3111 = vmatprep.subr.bf16.mxu0 %v2856
  %3112 = vmatpush1.bf16.msra.mxu0 %v2855
  %3113 = vmatprep.subr.bf16.mxu0 %v2858
  %3114 = vmatpush1.bf16.msra.mxu0 %v2857
  %3115 = vmatprep.subr.bf16.mxu0 %v2860
  %3116 = vmatpush1.bf16.msra.mxu0 %v2859
  %3117 = vmatprep.subr.bf16.mxu0 %v2862
  %3118 = vmatpush1.bf16.msra.mxu0 %v2861
  %3119 = vmatprep.subr.bf16.mxu0 %v2864
  %3120 = vmatpush1.bf16.msra.mxu0 %v2863
  %3121 = vmatprep.mubr.bf16.mxu0 %v2302
  %3122 = vmatmul.mubr.bf16.gmra.mrb[0].mxu0 %v2301
  %v3123 = vpop.f32.mrb[0].mxu0
  %v3124 = vadd.f32 %v2442, %v3123
  %v3125 = vpop.f32.mrb[0].mxu0
  %v3126 = vadd.f32 %v2446, %v3125
  %v3127 = vpop.f32.mrb[0].mxu0
  %v3128 = vpop.f32.mrb[0].mxu0
  %3129 = vdwg.mxu0
  %3130 = vmatprep.subr.bf16.mxu0 %v2866
  %3131 = vmatpush1.bf16.msra.mxu0 %v2865
  %3132 = vmatprep.subr.bf16.mxu0 %v2868
  %3133 = vmatpush1.bf16.msra.mxu0 %v2867
  %3134 = vmatprep.subr.bf16.mxu0 %v2870
  %3135 = vmatpush1.bf16.msra.mxu0 %v2869
  %3136 = vmatprep.subr.bf16.mxu0 %v2872
  %3137 = vmatpush1.bf16.msra.mxu0 %v2871
  %3138 = vmatprep.subr.bf16.mxu0 %v2874
  %3139 = vmatpush1.bf16.msra.mxu0 %v2873
  %3140 = vmatprep.subr.bf16.mxu0 %v2876
  %3141 = vmatpush1.bf16.msra.mxu0 %v2875
  %3142 = vmatprep.subr.bf16.mxu0 %v2878
  %3143 = vmatpush1.bf16.msra.mxu0 %v2877
  %3144 = vmatprep.subr.bf16.mxu0 %v2880
  %3145 = vmatpush1.bf16.msra.mxu0 %v2879
  %3146 = vmatprep.subr.bf16.mxu0 %v2882
  %3147 = vmatpush1.bf16.msra.mxu0 %v2881
  %3148 = vmatprep.subr.bf16.mxu0 %v2884
  %3149 = vmatpush1.bf16.msra.mxu0 %v2883
  %3150 = vmatprep.subr.bf16.mxu0 %v2886
  %3151 = vmatpush1.bf16.msra.mxu0 %v2885
  %3152 = vmatprep.subr.bf16.mxu0 %v2888
  %3153 = vmatpush1.bf16.msra.mxu0 %v2887
  %3154 = vmatprep.subr.bf16.mxu0 %v2890
  %3155 = vmatpush1.bf16.msra.mxu0 %v2889
  %3156 = vmatprep.subr.bf16.mxu0 %v2892
  %3157 = vmatpush1.bf16.msra.mxu0 %v2891
  %3158 = vmatprep.subr.bf16.mxu0 %v2894
  %3159 = vmatpush1.bf16.msra.mxu0 %v2893
  %3160 = vmatprep.subr.bf16.mxu0 %v2896
  %3161 = vmatpush1.bf16.msra.mxu0 %v2895
  %3162 = vmatprep.mubr.bf16.mxu0 %v2304
  %3163 = vmatmul.mubr.bf16.gmra.mrb[0].mxu0 %v2303
  %v3164 = vpop.f32.mrb[0].mxu0
  %v3165 = vadd.f32 %v3124, %v3164
  %v3166 = vpop.f32.mrb[0].mxu0
  %v3167 = vadd.f32 %v3126, %v3166
  %v3168 = vpop.f32.mrb[0].mxu0
  %v3169 = vpop.f32.mrb[0].mxu0
  %3170 = vdwg.mxu0
  %3171 = vmatprep.subr.bf16.mxu0 %v2898
  %3172 = vmatpush1.bf16.msra.mxu0 %v2897
  %3173 = vmatprep.subr.bf16.mxu0 %v2900
  %3174 = vmatpush1.bf16.msra.mxu0 %v2899
  %3175 = vmatprep.subr.bf16.mxu0 %v2902
  %3176 = vmatpush1.bf16.msra.mxu0 %v2901
  %3177 = vmatprep.subr.bf16.mxu0 %v2904
  %3178 = vmatpush1.bf16.msra.mxu0 %v2903
  %3179 = vmatprep.subr.bf16.mxu0 %v2906
  %3180 = vmatpush1.bf16.msra.mxu0 %v2905
  %3181 = vmatprep.subr.bf16.mxu0 %v2908
  %3182 = vmatpush1.bf16.msra.mxu0 %v2907
  %3183 = vmatprep.subr.bf16.mxu0 %v2910
  %3184 = vmatpush1.bf16.msra.mxu0 %v2909
  %3185 = vmatprep.subr.bf16.mxu0 %v2912
  %3186 = vmatpush1.bf16.msra.mxu0 %v2911
  %3187 = vmatprep.subr.bf16.mxu0 %v2914
  %3188 = vmatpush1.bf16.msra.mxu0 %v2913
  %3189 = vmatprep.subr.bf16.mxu0 %v2916
  %3190 = vmatpush1.bf16.msra.mxu0 %v2915
  %3191 = vmatprep.subr.bf16.mxu0 %v2918
  %3192 = vmatpush1.bf16.msra.mxu0 %v2917
  %3193 = vmatprep.subr.bf16.mxu0 %v2920
  %3194 = vmatpush1.bf16.msra.mxu0 %v2919
  %3195 = vmatprep.subr.bf16.mxu0 %v2922
  %3196 = vmatpush1.bf16.msra.mxu0 %v2921
  %3197 = vmatprep.subr.bf16.mxu0 %v2924
  %3198 = vmatpush1.bf16.msra.mxu0 %v2923
  %3199 = vmatprep.subr.bf16.mxu0 %v2926
  %3200 = vmatpush1.bf16.msra.mxu0 %v2925
  %3201 = vmatprep.subr.bf16.mxu0 %v2928
  %3202 = vmatpush1.bf16.msra.mxu0 %v2927
  %3203 = vmatprep.mubr.bf16.mxu0 %v2306
  %3204 = vmatmul.mubr.bf16.gmra.mrb[0].mxu0 %v2305
  %v3205 = vpop.f32.mrb[0].mxu0
  %v3206 = vadd.f32 %v3165, %v3205
  %v3207 = vpop.f32.mrb[0].mxu0
  %v3208 = vadd.f32 %v3167, %v3207
  %v3209 = vpop.f32.mrb[0].mxu0
  %v3210 = vpop.f32.mrb[0].mxu0
  %3211 = vdwg.mxu0
  %3212 = vmatprep.subr.bf16.mxu0 %v2930
  %3213 = vmatpush1.bf16.msra.mxu0 %v2929
  %3214 = vmatprep.subr.bf16.mxu0 %v2932
  %3215 = vmatpush1.bf16.msra.mxu0 %v2931
  %3216 = vmatprep.subr.bf16.mxu0 %v2934
  %3217 = vmatpush1.bf16.msra.mxu0 %v2933
  %3218 = vmatprep.subr.bf16.mxu0 %v2936
  %3219 = vmatpush1.bf16.msra.mxu0 %v2935
  %3220 = vmatprep.subr.bf16.mxu0 %v2938
  %3221 = vmatpush1.bf16.msra.mxu0 %v2937
  %3222 = vmatprep.subr.bf16.mxu0 %v2940
  %3223 = vmatpush1.bf16.msra.mxu0 %v2939
  %3224 = vmatprep.subr.bf16.mxu0 %v2942
  %3225 = vmatpush1.bf16.msra.mxu0 %v2941
  %3226 = vmatprep.subr.bf16.mxu0 %v2944
  %3227 = vmatpush1.bf16.msra.mxu0 %v2943
  %3228 = vmatprep.subr.bf16.mxu0 %v2946
  %3229 = vmatpush1.bf16.msra.mxu0 %v2945
  %3230 = vmatprep.subr.bf16.mxu0 %v2948
  %3231 = vmatpush1.bf16.msra.mxu0 %v2947
  %3232 = vmatprep.subr.bf16.mxu0 %v2950
  %3233 = vmatpush1.bf16.msra.mxu0 %v2949
  %3234 = vmatprep.subr.bf16.mxu0 %v2952
  %3235 = vmatpush1.bf16.msra.mxu0 %v2951
  %3236 = vmatprep.subr.bf16.mxu0 %v2954
  %3237 = vmatpush1.bf16.msra.mxu0 %v2953
  %3238 = vmatprep.subr.bf16.mxu0 %v2956
  %3239 = vmatpush1.bf16.msra.mxu0 %v2955
  %3240 = vmatprep.subr.bf16.mxu0 %v2958
  %3241 = vmatpush1.bf16.msra.mxu0 %v2957
  %3242 = vmatprep.subr.bf16.mxu0 %v2960
  %3243 = vmatpush1.bf16.msra.mxu0 %v2959
  %3244 = vmatprep.mubr.bf16.mxu0 %v2308
  %3245 = vmatmul.mubr.bf16.gmra.mrb[0].mxu0 %v2307
  %v3246 = vpop.f32.mrb[0].mxu0
  %v3247 = vadd.f32 %v3206, %v3246
  %v3248 = vpop.f32.mrb[0].mxu0
  %v3249 = vadd.f32 %v3208, %v3248
  %v3250 = vpop.f32.mrb[0].mxu0
  %v3251 = vpop.f32.mrb[0].mxu0
  %3252 = vdwg.mxu0
  %v3253 = vmul.f32 %v3247, %v3247
  %v3254 = vmul.f32 %v3249, %v3249
  %v3255 = vsel %vm34, %v3253, 0.0
  %v3256 = vsel %vm34, %v3254, 0.0
  %v3257 = vadd.f32 %v3255, %v3256
  %3258 = vadd.xlane.f32.xlu0 %v3257
  %v3259 = vpop.xlane.xlu0 %3258
  %v3260 = vrsqrt.pop %v3259
  %v3261 = vmul.f32 %v3259, %v3260
  %vm3262 = vcmp.eq.f32.partialorder %v3259, inf
  %v3263 = vsel %vm3262, %v3259, %v3261
  %vm3264 = vcmp.eq.f32.partialorder %v3259, 0.0
  %v3265 = vand.u32 %v3259, 2147483648
  %v3266 = vsel %vm3264, %v3265, %v3263
  %v3267 = vadd.f32 %v3266, 1e-07
  %v3268 = vrcp.pop %v3267
  %v3269 = vmul.f32 %v3247, %v3268
  %v3270 = vmul.f32 %v3249, %v3268
  %v3273 = vcombine.low %v3269, %v3270
  %3275 = vst [vmem:[%s6] sm:$0xff] %v3273
  // Predicated region
  $region26: #{_fft_and_mlp.1} parent=0 // pred_check
    _
  $region27: #{_fft_and_mlp.1} parent=0 // pred_check_branch
    %3277 = sbr.rel (0) target = $region29
  $region28: #{_fft_and_mlp.1} parent=0 // pred_region
    _
  $region29: #{_fft_and_mlp.1} parent=0 // pred_fallthru
    _
  // Predicated region
  $region30: #{_fft_and_mlp.1} parent=0 // pred_check
    _
  $region31: #{_fft_and_mlp.1} parent=0 // pred_check_branch
    %3279 = sbr.rel (0) target = $region33
  $region32: #{_fft_and_mlp.1} parent=0 // pred_region
    _
  $region33: #{_fft_and_mlp.1} parent=0 // pred_fallthru
    _

</llo_original>
